<compile_context>
chip_gen: v5e
topology: v5e:2x2
jax: 0.10.0
libtpu: 0.0.40
codegen_flags: <defaults>
</compile_context>

<pallas_src>
import jax
import jax.numpy as jnp
from jax.experimental import pallas as pl
from jax.experimental.pallas import tpu as pltpu


# ----------------------------- DDPM schedules (plain JAX glue) --------------
def ddpm_schedules(beta1: float, beta2: float, T: int):
    assert beta1 < beta2 < 1.0
    beta_t = (beta2 - beta1) * jnp.arange(0, T + 1, dtype=jnp.float32) / T + beta1
    sqrt_beta_t = jnp.sqrt(beta_t)
    alpha_t = 1.0 - beta_t
    log_alpha_t = jnp.log(alpha_t)
    alphabar_t = jnp.exp(jnp.cumsum(log_alpha_t))
    sqrtab = jnp.sqrt(alphabar_t)
    oneover_sqrta = 1.0 / jnp.sqrt(alpha_t)
    sqrtmab = jnp.sqrt(1.0 - alphabar_t)
    mab_over_sqrtmab = (1.0 - alpha_t) / sqrtmab
    return {
        "alpha_t": alpha_t,
        "oneover_sqrta": oneover_sqrta,
        "sqrt_beta_t": sqrt_beta_t,
        "alphabar_t": alphabar_t,
        "sqrtab": sqrtab,
        "sqrtmab": sqrtmab,
        "mab_over_sqrtmab": mab_over_sqrtmab,
    }


# ----------------------------- Pallas kernel --------------------------------
def diffusion_fwd_kernel(t_blk_ref,                       # scalar-prefetch (SMEM) int32[num_blocks]
                         x_ref, eps_ref,                  # (C, block_cols) VMEM tiles
                         a_blk_ref, b_blk_ref,            # f32[num_blocks] SMEM
                         tembT_ref,                       # (hidden, T_pad) VMEM resident
                         w1t_ref, b1t_ref, w2t_ref, b2t_ref,
                         out_ref,                         # (1, C, block_cols) partial SSE slab
                         acc_ref):                        # (C, block_cols) VMEM scratch
    i = pl.program_id(1)
    n_inner = pl.num_programs(1)

    # zero the per-part accumulator at the start of the inner (arbitrary) axis
    @pl.when(i == 0)
    def _():
        acc_ref[...] = jnp.zeros_like(acc_ref)

    # per-block timestep and schedule coefficients (all scalar reads, no DMA)
    blk = pl.program_id(0) * n_inner + i
    t = t_blk_ref[blk]
    a = a_blk_ref[blk]
    b = b_blk_ref[blk]

    # normalize_to_neg1_1 + q-sample (lane-dense, channel-major)
    x = x_ref[...] * 2.0 - 1.0
    eps = eps_ref[...]
    x_t = a * x + b * eps                                        # (C, cols)

    # exact time-embedding column selection via one-hot masked sum:
    # (hidden, T_pad) * (1, T_pad) summed over lanes -> (hidden, 1)
    t_pad = tembT_ref.shape[1]
    onehot = (jax.lax.broadcasted_iota(jnp.int32, (1, t_pad), 1) == t)
    temb_col = jnp.sum(tembT_ref[...] * onehot.astype(jnp.float32),
                       axis=1, keepdims=True)                    # (hidden, 1)

    # synthetic noise-prediction net: time-conditioned pointwise MLP (MXU)
    h = jnp.dot(w1t_ref[...], x_t,
                preferred_element_type=jnp.float32,
                precision=jax.lax.Precision.HIGHEST)             # (hidden, cols)
    h = jnp.maximum(h + temb_col + b1t_ref[...], 0.0)
    pred = jnp.dot(w2t_ref[...], h,
                   preferred_element_type=jnp.float32,
                   precision=jax.lax.Precision.HIGHEST) + b2t_ref[...]  # (C, cols)

    # squared error, accumulated element-wise (pure VPU; no per-step reduce)
    d = eps - pred
    acc_ref[...] += d * d

    # epilogue: emit the lane-dense partial-SSE slab for this grid part
    @pl.when(i == n_inner - 1)
    def _():
        out_ref[0] = acc_ref[...]


def diffusion_forward(x_nchw, key, params, schedules, n_T, *, max_block_cols=4096):
    """Scalar MSE loss matching the PyTorch forward semantics (with the
    synthetic `net` defined by `params`)."""
    B, C, H, W = x_nchw.shape
    hidden = params["w1"].shape[1]
    HW = H * W
    N = B * HW

    key_t, key_eps = jax.random.split(key)
    t = jax.random.randint(key_t, (B,), 1, n_T + 1)                    # (B,)
    eps_nchw = jax.random.normal(key_eps, x_nchw.shape, dtype=jnp.float32)

    # channel-major layout: (C, B*H*W) — channels on sublanes, pixels on lanes
    def to_cm(arr):
        return jnp.transpose(arr, (1, 0, 2, 3)).reshape(C, N)

    x_cm = to_cm(x_nchw.astype(jnp.float32))
    eps_cm = to_cm(eps_nchw)

    # block size along the pixel axis; must divide H*W so a block never
    # straddles a sample boundary (one timestep t per block)
    block_cols = HW
    while block_cols > max_block_cols and block_cols % 2 == 0:
        block_cols //= 2
    assert block_cols % 128 == 0 and HW % block_cols == 0, (HW, block_cols)

    num_blocks = N // block_cols
    blocks_per_sample = HW // block_cols
    P = 2 if num_blocks % 2 == 0 else 1        # split reduction across 2 TCs (v7x)
    bpp = num_blocks // P
    grid = (P, bpp)

    # per-block timestep (scalar prefetch) and per-block schedule coefficients
    t_block = jnp.repeat(t, blocks_per_sample).astype(jnp.int32)       # (num_blocks,)
    a_blk = schedules["sqrtab"].astype(jnp.float32)[t_block]           # (num_blocks,)
    b_blk = schedules["sqrtmab"].astype(jnp.float32)[t_block]          # (num_blocks,)

    # tiny on-chip tables / weights (transposed once for channel-major math);
    # temb table lane-padded to a multiple of 128 for clean vreg layout
    T1 = n_T + 1
    T_pad = ((T1 + 127) // 128) * 128
    temb_t = jnp.zeros((hidden, T_pad), jnp.float32).at[:, :T1].set(
        params["temb_table"].T.astype(jnp.float32))                    # (hidden, T_pad)
    w1t = params["w1"].T.astype(jnp.float32)                           # (hidden, C)
    b1t = params["b1"].T.astype(jnp.float32)                           # (hidden, 1)
    w2t = params["w2"].T.astype(jnp.float32)                           # (C, hidden)
    b2t = params["b2"].T.astype(jnp.float32)                           # (C, 1)

    data_spec = pl.BlockSpec((C, block_cols), lambda p, i, tb: (0, p * bpp + i))
    smem_spec = pl.BlockSpec(memory_space=pltpu.MemorySpace.SMEM)
    const_spec = lambda r, c: pl.BlockSpec((r, c), lambda p, i, tb: (0, 0))

    partials = pl.pallas_call(
        diffusion_fwd_kernel,
        out_shape=jax.ShapeDtypeStruct((P, C, block_cols), jnp.float32),
        grid_spec=pltpu.PrefetchScalarGridSpec(
            num_scalar_prefetch=1,
            grid=grid,
            in_specs=[
                data_spec,                      # x   (C, block_cols)
                data_spec,                      # eps (C, block_cols)
                smem_spec,                      # sqrtab[t]  per block (SMEM)
                smem_spec,                      # sqrtmab[t] per block (SMEM)
                const_spec(hidden, T_pad),      # temb_table^T (VMEM resident)
                const_spec(hidden, C),          # w1^T
                const_spec(hidden, 1),          # b1^T
                const_spec(C, hidden),          # w2^T
                const_spec(C, 1),               # b2^T
            ],
            out_specs=pl.BlockSpec((1, C, block_cols), lambda p, i, tb: (p, 0, 0)),
            scratch_shapes=[pltpu.VMEM((C, block_cols), jnp.float32)],
        ),
        compiler_params=pltpu.CompilerParams(
            dimension_semantics=("parallel", "arbitrary"),
        ),
    )(t_block, x_cm, eps_cm, a_blk, b_blk, temb_t, w1t, b1t, w2t, b2t)

    return jnp.sum(partials) / (B * C * H * W)


# ----------------------------- reference (plain JAX) -------------------------
def diffusion_forward_ref(x_nchw, key, params, schedules, n_T):
    B, C, H, W = x_nchw.shape
    key_t, key_eps = jax.random.split(key)
    t = jax.random.randint(key_t, (B,), 1, n_T + 1)
    eps = jax.random.normal(key_eps, x_nchw.shape, dtype=jnp.float32)
    x = x_nchw.astype(jnp.float32) * 2.0 - 1.0
    a = schedules["sqrtab"][t][:, None, None, None]
    b = schedules["sqrtmab"][t][:, None, None, None]
    x_t = a * x + b * eps
    # pointwise MLP net in NHWC-rows form
    xr = jnp.transpose(x_t, (0, 2, 3, 1)).reshape(B * H * W, C)
    temb = jnp.repeat(params["temb_table"][t], H * W, axis=0)
    h = jnp.maximum(
        jnp.dot(xr, params["w1"], precision=jax.lax.Precision.HIGHEST)
        + temb + params["b1"], 0.0)
    pred = jnp.dot(h, params["w2"], precision=jax.lax.Precision.HIGHEST) + params["b2"]
    pred = jnp.transpose(pred.reshape(B, H, W, C), (0, 3, 1, 2))
    return jnp.mean((eps - pred) ** 2)


# ----------------------------- main ------------------------------------------
if __name__ == "__main__":
    B, C, H, W = 2, 4, 16, 16
    hidden = 32
    n_T = 100
    betas = (1e-4, 0.02)

    schedules = ddpm_schedules(betas[0], betas[1], n_T)

    key = jax.random.PRNGKey(0)
    k_x, k_w1, k_w2, k_temb, k_fwd = jax.random.split(key, 5)

    # input image in [0, 1]  (NCHW, PyTorch convention)
    x = jax.random.uniform(k_x, (B, C, H, W), dtype=jnp.float32)

    # deterministic synthetic net parameters
    params = {
        "w1": jax.random.normal(k_w1, (C, hidden), dtype=jnp.float32) * 0.1,
        "b1": jnp.zeros((1, hidden), dtype=jnp.float32),
        "w2": jax.random.normal(k_w2, (hidden, C), dtype=jnp.float32) * 0.1,
        "b2": jnp.zeros((1, C), dtype=jnp.float32),
        "temb_table": jax.random.normal(k_temb, (n_T + 1, hidden), dtype=jnp.float32) * 0.1,
    }

    loss = diffusion_forward(x, k_fwd, params, schedules, n_T)
    loss = jax.block_until_ready(loss)

    loss_ref = diffusion_forward_ref(x, k_fwd, params, schedules, n_T)
    assert jnp.allclose(loss, loss_ref, rtol=1e-4, atol=1e-5), (loss, loss_ref)

    print("KERNEL_OK")
</pallas_src>

<mosaic_0001>
module attributes {stable_mosaic.version = 11 : i64} {
  func.func @diffusion_fwd_kernel(%arg0: i32, %arg1: i32, %arg2: memref<2xi32, #tpu.memory_space<smem>>, %arg3: memref<4x256xf32, #tpu.memory_space<vmem>>, %arg4: memref<4x256xf32, #tpu.memory_space<vmem>>, %arg5: memref<2xf32, #tpu.memory_space<smem>>, %arg6: memref<2xf32, #tpu.memory_space<smem>>, %arg7: memref<32x128xf32, #tpu.memory_space<vmem>>, %arg8: memref<32x4xf32, #tpu.memory_space<vmem>>, %arg9: memref<32x1xf32, #tpu.memory_space<vmem>>, %arg10: memref<4x32xf32, #tpu.memory_space<vmem>>, %arg11: memref<4x1xf32, #tpu.memory_space<vmem>>, %arg12: memref<1x4x256xf32, #tpu.memory_space<vmem>>, %arg13: memref<4x256xf32, #tpu.memory_space<vmem>>) attributes {dimension_semantics = [#tpu.dimension_semantics<parallel>, #tpu.dimension_semantics<arbitrary>], iteration_bounds = array<i64: 2, 1>, scalar_prefetch = 1 : i64, scratch_operands = 1 : i64, tpu.core_type = #tpu.core_type<tc>, window_params = [{transform_indices = @transform_0, window_bounds = array<i64: 4, 256>}, {transform_indices = @transform_1, window_bounds = array<i64: 4, 256>}, {transform_indices = @transform_2, window_bounds = array<i64: 2>}, {transform_indices = @transform_3, window_bounds = array<i64: 2>}, {pipeline_mode = #tpu.pipeline_mode<synchronous>, transform_indices = @transform_4, window_bounds = array<i64: 32, 128>}, {pipeline_mode = #tpu.pipeline_mode<synchronous>, transform_indices = @transform_5, window_bounds = array<i64: 32, 4>}, {pipeline_mode = #tpu.pipeline_mode<synchronous>, transform_indices = @transform_6, window_bounds = array<i64: 32, 1>}, {pipeline_mode = #tpu.pipeline_mode<synchronous>, transform_indices = @transform_7, window_bounds = array<i64: 4, 32>}, {pipeline_mode = #tpu.pipeline_mode<synchronous>, transform_indices = @transform_8, window_bounds = array<i64: 4, 1>}, {transform_indices = @transform_9, window_bounds = array<i64: 1, 4, 256>}]} {
    %c0_i32 = arith.constant 0 : i32
    %0 = arith.cmpi eq, %arg1, %c0_i32 : i32
    %1 = arith.extui %0 : i1 to i32
    %c0_i32_0 = arith.constant 0 : i32
    %2 = arith.cmpi ne, %1, %c0_i32_0 : i32
    scf.if %2 {
      %cst_25 = arith.constant 0.000000e+00 : f32
      %54 = vector.broadcast %cst_25 : f32 to vector<4x256xf32>
      %c0_26 = arith.constant 0 : index
      %c0_27 = arith.constant 0 : index
      %55 = vector.load %arg13[%c0_26, %c0_27] : memref<4x256xf32, #tpu.memory_space<vmem>>, vector<4x256xf32>
      tpu.vector_store %arg13[%c0_26, %c0_27], %54 {strides = array<i32>} : memref<4x256xf32, #tpu.memory_space<vmem>>, vector<4x256xf32>,
    } else {
    }
    %c1_i32 = arith.constant 1 : i32
    %3 = arith.muli %arg0, %c1_i32 : i32
    %4 = arith.addi %3, %arg1 : i32
    %5 = arith.index_cast %4 : i32 to index
    %6 = memref.load %arg2[%5] : memref<2xi32, #tpu.memory_space<smem>>
    %7 = arith.index_cast %4 : i32 to index
    %8 = memref.load %arg5[%7] : memref<2xf32, #tpu.memory_space<smem>>
    %9 = arith.index_cast %4 : i32 to index
    %10 = memref.load %arg6[%9] : memref<2xf32, #tpu.memory_space<smem>>
    %c0 = arith.constant 0 : index
    %c0_1 = arith.constant 0 : index
    %11 = vector.load %arg3[%c0, %c0_1] : memref<4x256xf32, #tpu.memory_space<vmem>>, vector<4x256xf32>
    %cst = arith.constant 2.000000e+00 : f32
    %12 = vector.broadcast %cst : f32 to vector<4x256xf32>
    %13 = arith.mulf %11, %12 : vector<4x256xf32>
    %cst_2 = arith.constant 1.000000e+00 : f32
    %14 = vector.broadcast %cst_2 : f32 to vector<4x256xf32>
    %15 = arith.subf %13, %14 : vector<4x256xf32>
    %c0_3 = arith.constant 0 : index
    %c0_4 = arith.constant 0 : index
    %16 = vector.load %arg4[%c0_3, %c0_4] : memref<4x256xf32, #tpu.memory_space<vmem>>, vector<4x256xf32>
    %17 = vector.broadcast %8 : f32 to vector<4x256xf32>
    %18 = arith.mulf %17, %15 : vector<4x256xf32>
    %19 = vector.broadcast %10 : f32 to vector<4x256xf32>
    %20 = arith.mulf %19, %16 : vector<4x256xf32>
    %21 = arith.addf %18, %20 : vector<4x256xf32>
    %22 = tpu.iota {dimensions = array<i32: 1>} : vector<1x128xi32>
    %23 = vector.broadcast %6 : i32 to vector<1x128xi32>
    %24 = arith.cmpi eq, %22, %23 : vector<1x128xi32>
    %c0_5 = arith.constant 0 : index
    %c0_6 = arith.constant 0 : index
    %25 = vector.load %arg7[%c0_5, %c0_6] : memref<32x128xf32, #tpu.memory_space<vmem>>, vector<32x128xf32>
    %26 = arith.extui %24 : vector<1x128xi1> to vector<1x128xi32>
    %27 = arith.sitofp %26 : vector<1x128xi32> to vector<1x128xf32>
    %28 = vector.broadcast %27 : vector<1x128xf32> to vector<32x128xf32>
    %29 = arith.mulf %25, %28 : vector<32x128xf32>
    %cst_7 = arith.constant dense<0.000000e+00> : vector<32xf32>
    %30 = vector.multi_reduction <add>, %29, %cst_7 [1] : vector<32x128xf32> to vector<32xf32>
    %31 = vector.shape_cast %30 : vector<32xf32> to vector<32x1xf32>
    %c0_8 = arith.constant 0 : index
    %c0_9 = arith.constant 0 : index
    %32 = vector.load %arg8[%c0_8, %c0_9] : memref<32x4xf32, #tpu.memory_space<vmem>>, vector<32x4xf32>
    %cst_10 = arith.constant dense<0.000000e+00> : vector<32x256xf32>
    %33 = tpu.matmul %32, %21, %cst_10 {dimension_numbers = #tpu.dot_dimension_numbers<[1], [0], [0], [1], [0, 0, 1, 1], [], []>, precision = #tpu.contract_precision<fp32>} : vector<32x4xf32>, vector<4x256xf32>, vector<32x256xf32> -> vector<32x256xf32>
    %34 = vector.broadcast %31 : vector<32x1xf32> to vector<32x256xf32>
    %35 = arith.addf %33, %34 : vector<32x256xf32>
    %c0_11 = arith.constant 0 : index
    %c0_12 = arith.constant 0 : index
    %36 = vector.load %arg9[%c0_11, %c0_12] : memref<32x1xf32, #tpu.memory_space<vmem>>, vector<32x1xf32>
    %37 = vector.broadcast %36 : vector<32x1xf32> to vector<32x256xf32>
    %38 = arith.addf %35, %37 : vector<32x256xf32>
    %cst_13 = arith.constant 0.000000e+00 : f32
    %39 = vector.broadcast %cst_13 : f32 to vector<32x256xf32>
    %40 = arith.maximumf %38, %39 : vector<32x256xf32>
    %c0_14 = arith.constant 0 : index
    %c0_15 = arith.constant 0 : index
    %41 = vector.load %arg10[%c0_14, %c0_15] : memref<4x32xf32, #tpu.memory_space<vmem>>, vector<4x32xf32>
    %cst_16 = arith.constant dense<0.000000e+00> : vector<4x256xf32>
    %42 = tpu.matmul %41, %40, %cst_16 {dimension_numbers = #tpu.dot_dimension_numbers<[1], [0], [0], [1], [0, 0, 1, 1], [], []>, precision = #tpu.contract_precision<fp32>} : vector<4x32xf32>, vector<32x256xf32>, vector<4x256xf32> -> vector<4x256xf32>
    %c0_17 = arith.constant 0 : index
    %c0_18 = arith.constant 0 : index
    %43 = vector.load %arg11[%c0_17, %c0_18] : memref<4x1xf32, #tpu.memory_space<vmem>>, vector<4x1xf32>
    %44 = vector.broadcast %43 : vector<4x1xf32> to vector<4x256xf32>
    %45 = arith.addf %42, %44 : vector<4x256xf32>
    %46 = arith.subf %16, %45 : vector<4x256xf32>
    %c0_19 = arith.constant 0 : index
    %c0_20 = arith.constant 0 : index
    %47 = vector.load %arg13[%c0_19, %c0_20] : memref<4x256xf32, #tpu.memory_space<vmem>>, vector<4x256xf32>
    %48 = arith.mulf %46, %46 : vector<4x256xf32>
    %49 = arith.addf %47, %48 : vector<4x256xf32>
    %c0_21 = arith.constant 0 : index
    %c0_22 = arith.constant 0 : index
    %50 = vector.load %arg13[%c0_21, %c0_22] : memref<4x256xf32, #tpu.memory_space<vmem>>, vector<4x256xf32>
    tpu.vector_store %arg13[%c0_21, %c0_22], %49 {strides = array<i32>} : memref<4x256xf32, #tpu.memory_space<vmem>>, vector<4x256xf32>,
    %c0_i32_23 = arith.constant 0 : i32
    %51 = arith.cmpi eq, %arg1, %c0_i32_23 : i32
    %52 = arith.extui %51 : i1 to i32
    %c0_i32_24 = arith.constant 0 : i32
    %53 = arith.cmpi ne, %52, %c0_i32_24 : i32
    scf.if %53 {
      %c0_25 = arith.constant 0 : index
      %c0_26 = arith.constant 0 : index
      %54 = vector.load %arg13[%c0_25, %c0_26] : memref<4x256xf32, #tpu.memory_space<vmem>>, vector<4x256xf32>
      %c0_27 = arith.constant 0 : index
      %c0_28 = arith.constant 0 : index
      %c0_29 = arith.constant 0 : index
      %55 = vector.load %arg12[%c0_27, %c0_28, %c0_29] : memref<1x4x256xf32, #tpu.memory_space<vmem>>, vector<1x4x256xf32>
      %56 = vector.shape_cast %55 : vector<1x4x256xf32> to vector<4x256xf32>
      %57 = vector.shape_cast %54 : vector<4x256xf32> to vector<1x4x256xf32>
      tpu.vector_store %arg12[%c0_27, %c0_28, %c0_29], %57 {strides = array<i32>} : memref<1x4x256xf32, #tpu.memory_space<vmem>>, vector<1x4x256xf32>,
    } else {
    }
    return
  }
  func.func @transform_0(%arg0: i32, %arg1: i32, %arg2: memref<2xi32, #tpu.memory_space<smem>>) -> (i32, i32) {
    %c1_i32 = arith.constant 1 : i32
    %0 = arith.muli %arg0, %c1_i32 : i32
    %1 = arith.addi %0, %arg1 : i32
    %c0_i32 = arith.constant 0 : i32
    %c0_i32_0 = arith.constant 0 : i32
    return %c0_i32, %1 : i32, i32
  }
  func.func @transform_1(%arg0: i32, %arg1: i32, %arg2: memref<2xi32, #tpu.memory_space<smem>>) -> (i32, i32) {
    %c1_i32 = arith.constant 1 : i32
    %0 = arith.muli %arg0, %c1_i32 : i32
    %1 = arith.addi %0, %arg1 : i32
    %c0_i32 = arith.constant 0 : i32
    %c0_i32_0 = arith.constant 0 : i32
    return %c0_i32, %1 : i32, i32
  }
  func.func @transform_2(%arg0: i32, %arg1: i32, %arg2: memref<2xi32, #tpu.memory_space<smem>>) -> i32 {
    %c0_i32 = arith.constant 0 : i32
    %c0_i32_0 = arith.constant 0 : i32
    return %c0_i32 : i32
  }
  func.func @transform_3(%arg0: i32, %arg1: i32, %arg2: memref<2xi32, #tpu.memory_space<smem>>) -> i32 {
    %c0_i32 = arith.constant 0 : i32
    %c0_i32_0 = arith.constant 0 : i32
    return %c0_i32 : i32
  }
  func.func @transform_4(%arg0: i32, %arg1: i32, %arg2: memref<2xi32, #tpu.memory_space<smem>>) -> (i32, i32) {
    %c0_i32 = arith.constant 0 : i32
    %c0_i32_0 = arith.constant 0 : i32
    %c0_i32_1 = arith.constant 0 : i32
    return %c0_i32, %c0_i32_0 : i32, i32
  }
  func.func @transform_5(%arg0: i32, %arg1: i32, %arg2: memref<2xi32, #tpu.memory_space<smem>>) -> (i32, i32) {
    %c0_i32 = arith.constant 0 : i32
    %c0_i32_0 = arith.constant 0 : i32
    %c0_i32_1 = arith.constant 0 : i32
    return %c0_i32, %c0_i32_0 : i32, i32
  }
  func.func @transform_6(%arg0: i32, %arg1: i32, %arg2: memref<2xi32, #tpu.memory_space<smem>>) -> (i32, i32) {
    %c0_i32 = arith.constant 0 : i32
    %c0_i32_0 = arith.constant 0 : i32
    %c0_i32_1 = arith.constant 0 : i32
    return %c0_i32, %c0_i32_0 : i32, i32
  }
  func.func @transform_7(%arg0: i32, %arg1: i32, %arg2: memref<2xi32, #tpu.memory_space<smem>>) -> (i32, i32) {
    %c0_i32 = arith.constant 0 : i32
    %c0_i32_0 = arith.constant 0 : i32
    %c0_i32_1 = arith.constant 0 : i32
    return %c0_i32, %c0_i32_0 : i32, i32
  }
  func.func @transform_8(%arg0: i32, %arg1: i32, %arg2: memref<2xi32, #tpu.memory_space<smem>>) -> (i32, i32) {
    %c0_i32 = arith.constant 0 : i32
    %c0_i32_0 = arith.constant 0 : i32
    %c0_i32_1 = arith.constant 0 : i32
    return %c0_i32, %c0_i32_0 : i32, i32
  }
  func.func @transform_9(%arg0: i32, %arg1: i32, %arg2: memref<2xi32, #tpu.memory_space<smem>>) -> (i32, i32, i32) {
    %c0_i32 = arith.constant 0 : i32
    %c0_i32_0 = arith.constant 0 : i32
    %c0_i32_1 = arith.constant 0 : i32
    return %arg0, %c0_i32, %c0_i32_0 : i32, i32, i32
  }
}

</mosaic_0001>

<llo_original>
// kernel: tpu_custom_call.1
$region0: #{tpu_custom_call.1}
  #allocation0 [shape = 'u32[]', space=smem, size = 0x4, offset = 0x4, fixed_abs, tag = 'smem constant byte address 0x4 - core index']
  #allocation1 [shape = 'u32[72,128]{1,0:T(1,128)}', space=vmem, size = 0x9000, scoped, tag = 'internal scratch']
  #allocation2 [shape = 'f32[4,256]{1,0:T(4,128)}', space=vmem, size = 0x1000, scoped, tag = 'scratch operand']
  #allocation3 [shape = 's32[1]{0}', space=sflag, size = 0x4, scoped, tag = 'scoped memory for tpu_custom_call.1']
  #allocation4 [shape = 'u8[512]{0}', space=smem, size = 0x200, scoped, tag = 'prefetched SMEM operand 0']
  %s0 = inlined_call_operand.vmem [shape: s32[2], index: 0, kind: input, shape index: {}]
  %s1 = inlined_call_operand.vmem [shape: f32[4,512], index: 1, kind: input, shape index: {}]
  %s2 = inlined_call_operand.vmem [shape: f32[4,512], index: 2, kind: input, shape index: {}]
  %s3 = inlined_call_operand.vmem [shape: f32[2], index: 3, kind: input, shape index: {}]
  %s4 = inlined_call_operand.vmem [shape: f32[2], index: 4, kind: input, shape index: {}]
  %s5 = inlined_call_operand.vmem [shape: f32[32,128], index: 5, kind: input, shape index: {}]
  %s6 = inlined_call_operand.vmem [shape: f32[32,4], index: 6, kind: input, shape index: {}]
  %s7 = inlined_call_operand.vmem [shape: f32[32,1], index: 7, kind: input, shape index: {}]
  %s8 = inlined_call_operand.vmem [shape: f32[4,32], index: 8, kind: input, shape index: {}]
  %s9 = inlined_call_operand.vmem [shape: f32[4,1], index: 9, kind: input, shape index: {}]
  %s10 = inlined_call_operand.hbm [shape: f32[2,4,256], index: 10, kind: output, shape index: {}]
  %s11 = sld [smem:[#allocation0]]
  $region85: #{tpu_custom_call.1} parent=0
    _
  %s13 = ssub.s32 1, %s11
  %s14 = scalar_select 0, %s13, %s11
  %s16 = sshll.u32 %s0, 4
  %s17 = int_to_ptr.vmem [resolvable:$true] %s16
  %19 = dma.vmem_to_smem %s17, 16, [#allocation4], [#allocation3]
  %21 = dma.done [#allocation3], 16
  %22 = sfence
  $region1: #{tpu_custom_call.1} parent=0
    #allocation5 [shape = 'u8[512]{0}', space=smem, size = 0x200, scoped, tag = 'input window, operand 3, single buffered']
    #allocation6 [shape = 's32[2]{0}', space=sflag, size = 0x8, scoped, tag = 'scoped memory for tpu_custom_call.1']
    #allocation7 [shape = 's32[2]{0}', space=sflag, size = 0x8, scoped, tag = 'scoped memory for tpu_custom_call.1']
    #allocation8 [shape = 'u8[512]{0}', space=smem, size = 0x200, scoped, tag = 'input window, operand 4, single buffered']
    #allocation9 [shape = 's32[1]{0}', space=sflag, size = 0x4, scoped, tag = 'scoped memory for tpu_custom_call.1']
    #allocation10 [shape = 'u8[8192]{0}', space=vmem, size = 0x2000, scoped, tag = 'output window, operand 0']
    %23 = vsyncpa [#allocation7], 0
    %24 = vsyncpa [#allocation9], 0
    %25 = vsyncpa [#allocation6], 0
    %s26 = scalar_lea.sflag [#allocation6], 1
    %27 = vsyncpa %s26, 0
    loop: start=0, step=1, limit=4
    $region2: #{tpu_custom_call.1} parent=1 // loop_pre_header
      _
    $region3: #{tpu_custom_call.1} parent=1 // loop_header
      %s29 = sphi 0, %s33
      %p30 = scmp.ge.s32.totalorder %s29, 4
      %s36 = sphi 0, %s48
      %s37 = sphi 0, %s44
      %s38 = sphi 0, %s36
      %s39 = sphi 0, %s37
      %s40 = sphi 0, %s38
      %s41 = sphi 0, %s39
      %s53 = sphi 0, %s55
      %s56 = sphi 0, %s53
      %s57 = sphi 0, %s56
      %s73 = sphi 0, %s57
      %s81 = sphi 0, %s83
      %s84 = sphi 0, %s81
      %s85 = sphi 0, %s84
      %s101 = sphi 0, %s85
      %s105 = sphi 0, %s105
      %s107 = sphi 0, %s105
      %s108 = sphi 0, %s107
      %s122 = sphi 0, %s108
      %s126 = sphi 0, %s126
      %s128 = sphi 0, %s126
      %s129 = sphi 0, %s128
      %s143 = sphi 0, %s129
      %s147 = sphi 0, %s147
      %s149 = sphi 0, %s147
      %s150 = sphi 0, %s149
      %s164 = sphi 0, %s150
      %s168 = sphi 0, %s168
      %s170 = sphi 0, %s168
      %s171 = sphi 0, %s170
      %s185 = sphi 0, %s171
      %s189 = sphi 0, %s189
      %s191 = sphi 0, %s189
      %s192 = sphi 0, %s191
      %s206 = sphi 0, %s192
      %s210 = sphi 0, %s210
      %s212 = sphi 0, %s210
      %s213 = sphi 0, %s212
      %s227 = sphi 0, %s213
      %s231 = sphi 0, %s231
      %s233 = sphi 0, %s231
      %s234 = sphi 0, %s233
      %s248 = sphi 0, %s234
      %s254 = sphi 0, %s256
      %s257 = sphi 0, %s254
      %s258 = sphi 0, %s257
      %s274 = sphi 0, %s258
    $region4: #{tpu_custom_call.1} parent=1 // loop_header_branch
      %32 = sbr.rel (%p30) target = $region8
    $region5: #{tpu_custom_call.1} parent=1 // loop_body
      %s34 = ssub.s32 %s29, 1
      %s35 = ssub.s32 %s29, 2
      %s42 = sadd.s32 1, %s37
      %p43 = scmp.ge.s32.totalorder %s42, 1
      %s44 = scalar_select %p43, 0, %s42
      %s45 = sadd.s32 1, %s36
      %s46 = scalar_select %p43, %s45, %s36
      %p47 = scmp.ge.s32.totalorder %s46, 2
      %s48 = scalar_select %p47, 0, %s46
      %s49 = sadd.s32 %s36, %s37
      %s50 = sadd.s32 %s48, %s44
      %s51 = ssub.s32 %s49, %s50
      %p52 = scmp.eq.s32.totalorder %s51, 0
      %s54 = sadd.s32 %s53, 1
      %s55 = scalar_select %p52, %s53, %s54
      %p58 = pneg %p52
      %p59 = scmp.eq.s32.totalorder %s29, 1
      %p60 = por %p58, %p59
      %p61 = scmp.ne.s32.totalorder %s53, %s56
      %p62 = scmp.eq.s32.totalorder %s29, 0
      %p63 = por %p61, %p62
      %p64 = scmp.ne.s32.totalorder %s53, %s56
      %p65 = scmp.eq.s32.totalorder %s34, 1
      %p66 = por %p64, %p65
      %p67 = scmp.ne.s32.totalorder %s56, %s57
      %p68 = scmp.eq.s32.totalorder %s34, 0
      %p69 = por %p67, %p68
      %p70 = scmp.ne.s32.totalorder %s56, %s57
      %p71 = scmp.eq.s32.totalorder %s35, 1
      %p72 = por %p70, %p71
      %p74 = scmp.ne.s32.totalorder %s57, %s73
      %p75 = scmp.eq.s32.totalorder %s35, 0
      %p76 = por %p74, %p75
      %s77 = sadd.s32 %s36, %s37
      %s78 = sadd.s32 %s48, %s44
      %s79 = ssub.s32 %s77, %s78
      %p80 = scmp.eq.s32.totalorder %s79, 0
      %s82 = sadd.s32 %s81, 1
      %s83 = scalar_select %p80, %s81, %s82
      %p86 = pneg %p80
      %p87 = scmp.eq.s32.totalorder %s29, 1
      %p88 = por %p86, %p87
      %p89 = scmp.ne.s32.totalorder %s81, %s84
      %p90 = scmp.eq.s32.totalorder %s29, 0
      %p91 = por %p89, %p90
      %p92 = scmp.ne.s32.totalorder %s81, %s84
      %p93 = scmp.eq.s32.totalorder %s34, 1
      %p94 = por %p92, %p93
      %p95 = scmp.ne.s32.totalorder %s84, %s85
      %p96 = scmp.eq.s32.totalorder %s34, 0
      %p97 = por %p95, %p96
      %p98 = scmp.ne.s32.totalorder %s84, %s85
      %p99 = scmp.eq.s32.totalorder %s35, 1
      %p100 = por %p98, %p99
      %p102 = scmp.ne.s32.totalorder %s85, %s101
      %p103 = scmp.eq.s32.totalorder %s35, 0
      %p104 = por %p102, %p103
      %s106 = sadd.s32 %s105, 1
      %p109 = scmp.eq.s32.totalorder %s29, 1
      %p110 = scmp.ne.s32.totalorder %s105, %s107
      %p111 = scmp.eq.s32.totalorder %s29, 0
      %p112 = por %p110, %p111
      %p113 = scmp.ne.s32.totalorder %s105, %s107
      %p114 = scmp.eq.s32.totalorder %s34, 1
      %p115 = por %p113, %p114
      %p116 = scmp.ne.s32.totalorder %s107, %s108
      %p117 = scmp.eq.s32.totalorder %s34, 0
      %p118 = por %p116, %p117
      %p119 = scmp.ne.s32.totalorder %s107, %s108
      %p120 = scmp.eq.s32.totalorder %s35, 1
      %p121 = por %p119, %p120
      %p123 = scmp.ne.s32.totalorder %s108, %s122
      %p124 = scmp.eq.s32.totalorder %s35, 0
      %p125 = por %p123, %p124
      %s127 = sadd.s32 %s126, 1
      %p130 = scmp.eq.s32.totalorder %s29, 1
      %p131 = scmp.ne.s32.totalorder %s126, %s128
      %p132 = scmp.eq.s32.totalorder %s29, 0
      %p133 = por %p131, %p132
      %p134 = scmp.ne.s32.totalorder %s126, %s128
      %p135 = scmp.eq.s32.totalorder %s34, 1
      %p136 = por %p134, %p135
      %p137 = scmp.ne.s32.totalorder %s128, %s129
      %p138 = scmp.eq.s32.totalorder %s34, 0
      %p139 = por %p137, %p138
      %p140 = scmp.ne.s32.totalorder %s128, %s129
      %p141 = scmp.eq.s32.totalorder %s35, 1
      %p142 = por %p140, %p141
      %p144 = scmp.ne.s32.totalorder %s129, %s143
      %p145 = scmp.eq.s32.totalorder %s35, 0
      %p146 = por %p144, %p145
      %s148 = sadd.s32 %s147, 1
      %p151 = scmp.eq.s32.totalorder %s29, 1
      %p152 = scmp.ne.s32.totalorder %s147, %s149
      %p153 = scmp.eq.s32.totalorder %s29, 0
      %p154 = por %p152, %p153
      %p155 = scmp.ne.s32.totalorder %s147, %s149
      %p156 = scmp.eq.s32.totalorder %s34, 1
      %p157 = por %p155, %p156
      %p158 = scmp.ne.s32.totalorder %s149, %s150
      %p159 = scmp.eq.s32.totalorder %s34, 0
      %p160 = por %p158, %p159
      %p161 = scmp.ne.s32.totalorder %s149, %s150
      %p162 = scmp.eq.s32.totalorder %s35, 1
      %p163 = por %p161, %p162
      %p165 = scmp.ne.s32.totalorder %s150, %s164
      %p166 = scmp.eq.s32.totalorder %s35, 0
      %p167 = por %p165, %p166
      %s169 = sadd.s32 %s168, 1
      %p172 = scmp.eq.s32.totalorder %s29, 1
      %p173 = scmp.ne.s32.totalorder %s168, %s170
      %p174 = scmp.eq.s32.totalorder %s29, 0
      %p175 = por %p173, %p174
      %p176 = scmp.ne.s32.totalorder %s168, %s170
      %p177 = scmp.eq.s32.totalorder %s34, 1
      %p178 = por %p176, %p177
      %p179 = scmp.ne.s32.totalorder %s170, %s171
      %p180 = scmp.eq.s32.totalorder %s34, 0
      %p181 = por %p179, %p180
      %p182 = scmp.ne.s32.totalorder %s170, %s171
      %p183 = scmp.eq.s32.totalorder %s35, 1
      %p184 = por %p182, %p183
      %p186 = scmp.ne.s32.totalorder %s171, %s185
      %p187 = scmp.eq.s32.totalorder %s35, 0
      %p188 = por %p186, %p187
      %s190 = sadd.s32 %s189, 1
      %p193 = scmp.eq.s32.totalorder %s29, 1
      %p194 = scmp.ne.s32.totalorder %s189, %s191
      %p195 = scmp.eq.s32.totalorder %s29, 0
      %p196 = por %p194, %p195
      %p197 = scmp.ne.s32.totalorder %s189, %s191
      %p198 = scmp.eq.s32.totalorder %s34, 1
      %p199 = por %p197, %p198
      %p200 = scmp.ne.s32.totalorder %s191, %s192
      %p201 = scmp.eq.s32.totalorder %s34, 0
      %p202 = por %p200, %p201
      %p203 = scmp.ne.s32.totalorder %s191, %s192
      %p204 = scmp.eq.s32.totalorder %s35, 1
      %p205 = por %p203, %p204
      %p207 = scmp.ne.s32.totalorder %s192, %s206
      %p208 = scmp.eq.s32.totalorder %s35, 0
      %p209 = por %p207, %p208
      %s211 = sadd.s32 %s210, 1
      %p214 = scmp.eq.s32.totalorder %s29, 1
      %p215 = scmp.ne.s32.totalorder %s210, %s212
      %p216 = scmp.eq.s32.totalorder %s29, 0
      %p217 = por %p215, %p216
      %p218 = scmp.ne.s32.totalorder %s210, %s212
      %p219 = scmp.eq.s32.totalorder %s34, 1
      %p220 = por %p218, %p219
      %p221 = scmp.ne.s32.totalorder %s212, %s213
      %p222 = scmp.eq.s32.totalorder %s34, 0
      %p223 = por %p221, %p222
      %p224 = scmp.ne.s32.totalorder %s212, %s213
      %p225 = scmp.eq.s32.totalorder %s35, 1
      %p226 = por %p224, %p225
      %p228 = scmp.ne.s32.totalorder %s213, %s227
      %p229 = scmp.eq.s32.totalorder %s35, 0
      %p230 = por %p228, %p229
      %s232 = sadd.s32 %s231, 1
      %p235 = scmp.eq.s32.totalorder %s29, 1
      %p236 = scmp.ne.s32.totalorder %s231, %s233
      %p237 = scmp.eq.s32.totalorder %s29, 0
      %p238 = por %p236, %p237
      %p239 = scmp.ne.s32.totalorder %s231, %s233
      %p240 = scmp.eq.s32.totalorder %s34, 1
      %p241 = por %p239, %p240
      %p242 = scmp.ne.s32.totalorder %s233, %s234
      %p243 = scmp.eq.s32.totalorder %s34, 0
      %p244 = por %p242, %p243
      %p245 = scmp.ne.s32.totalorder %s233, %s234
      %p246 = scmp.eq.s32.totalorder %s35, 1
      %p247 = por %p245, %p246
      %p249 = scmp.ne.s32.totalorder %s234, %s248
      %p250 = scmp.eq.s32.totalorder %s35, 0
      %p251 = por %p249, %p250
      %s252 = ssub.s32 %s36, %s48
      %p253 = scmp.eq.s32.totalorder %s252, 0
      %s255 = sadd.s32 %s254, 1
      %s256 = scalar_select %p253, %s254, %s255
      %p259 = pneg %p253
      %p260 = scmp.eq.s32.totalorder %s29, 1
      %p261 = por %p259, %p260
      %p262 = scmp.ne.s32.totalorder %s254, %s257
      %p263 = scmp.eq.s32.totalorder %s29, 0
      %p264 = por %p262, %p263
      %p265 = scmp.ne.s32.totalorder %s254, %s257
      %p266 = scmp.eq.s32.totalorder %s34, 1
      %p267 = por %p265, %p266
      %p268 = scmp.ne.s32.totalorder %s257, %s258
      %p269 = scmp.eq.s32.totalorder %s34, 0
      %p270 = por %p268, %p269
      %p271 = scmp.ne.s32.totalorder %s257, %s258
      %p272 = scmp.eq.s32.totalorder %s35, 1
      %p273 = por %p271, %p272
      %p275 = scmp.ne.s32.totalorder %s258, %s274
      %p276 = scmp.eq.s32.totalorder %s35, 0
      %p277 = por %p275, %p276
      %p278 = scmp.le.s32.totalorder 1, %s29
      %p279 = scmp.lt.s32.totalorder %s29, 3
      %p280 = pnand %p278, %p279
      %p281 = pneg %p280
      // Predicated region
      $region9: #{tpu_custom_call.1} parent=5 // pred_check
        _
      $region10: #{tpu_custom_call.1} parent=5 // pred_check_branch
        %283 = sbr.rel (%p280) target = $region12
      $region11: #{tpu_custom_call.1} parent=5 // pred_region
        %s284 = ssub.s32 %s29, 1
        // Predicated region
        $region13: #{tpu_custom_call.1} parent=11 // pred_check
          %p285 = pneg %p118
        $region14: #{tpu_custom_call.1} parent=11 // pred_check_branch
          %287 = sbr.rel (%p285) target = $region16
        $region15: #{tpu_custom_call.1} parent=11 // pred_region
          %289 = vsyncadd [#allocation7], 0
          %s291 = sshll.u32 %s3, 4
          %s292 = int_to_ptr.vmem [resolvable:$true] %s291
          %294 = dma.vmem_to_smem %s292, 16, [#allocation5], [#allocation7]
        $region16: #{tpu_custom_call.1} parent=11 // pred_fallthru
          _
        // Predicated region
        $region17: #{tpu_custom_call.1} parent=11 // pred_check
          %p295 = pneg %p139
        $region18: #{tpu_custom_call.1} parent=11 // pred_check_branch
          %297 = sbr.rel (%p295) target = $region20
        $region19: #{tpu_custom_call.1} parent=11 // pred_region
          %299 = vsyncadd [#allocation9], 0
          %s301 = sshll.u32 %s4, 4
          %s302 = int_to_ptr.vmem [resolvable:$true] %s301
          %304 = dma.vmem_to_smem %s302, 16, [#allocation8], [#allocation9]
        $region20: #{tpu_custom_call.1} parent=11 // pred_fallthru
          _
        // Predicated region
        $region21: #{tpu_custom_call.1} parent=11 // pred_check
          %p305 = pneg %p160
        $region22: #{tpu_custom_call.1} parent=11 // pred_check_branch
          %307 = sbr.rel (%p305) target = $region24
        $region23: #{tpu_custom_call.1} parent=11 // pred_region
          _
        $region24: #{tpu_custom_call.1} parent=11 // pred_fallthru
          _
        // Predicated region
        $region25: #{tpu_custom_call.1} parent=11 // pred_check
          %p308 = pneg %p181
        $region26: #{tpu_custom_call.1} parent=11 // pred_check_branch
          %310 = sbr.rel (%p308) target = $region28
        $region27: #{tpu_custom_call.1} parent=11 // pred_region
          _
        $region28: #{tpu_custom_call.1} parent=11 // pred_fallthru
          _
        // Predicated region
        $region29: #{tpu_custom_call.1} parent=11 // pred_check
          %p311 = pneg %p202
        $region30: #{tpu_custom_call.1} parent=11 // pred_check_branch
          %313 = sbr.rel (%p311) target = $region32
        $region31: #{tpu_custom_call.1} parent=11 // pred_region
          _
        $region32: #{tpu_custom_call.1} parent=11 // pred_fallthru
          _
        // Predicated region
        $region33: #{tpu_custom_call.1} parent=11 // pred_check
          %p314 = pneg %p223
        $region34: #{tpu_custom_call.1} parent=11 // pred_check_branch
          %316 = sbr.rel (%p314) target = $region36
        $region35: #{tpu_custom_call.1} parent=11 // pred_region
          _
        $region36: #{tpu_custom_call.1} parent=11 // pred_fallthru
          _
        // Predicated region
        $region37: #{tpu_custom_call.1} parent=11 // pred_check
          %p317 = pneg %p244
        $region38: #{tpu_custom_call.1} parent=11 // pred_check_branch
          %319 = sbr.rel (%p317) target = $region40
        $region39: #{tpu_custom_call.1} parent=11 // pred_region
          _
        $region40: #{tpu_custom_call.1} parent=11 // pred_fallthru
          _
      $region12: #{tpu_custom_call.1} parent=5 // pred_fallthru
        _
      %p320 = scmp.lt.s32.totalorder %s29, 2
      // Predicated region
      $region41: #{tpu_custom_call.1} parent=5 // pred_check
        %p321 = pneg %p320
      $region42: #{tpu_custom_call.1} parent=5 // pred_check_branch
        %323 = sbr.rel (%p321) target = $region44
      $region43: #{tpu_custom_call.1} parent=5 // pred_region
        // Predicated region
        $region45: #{tpu_custom_call.1} parent=43 // pred_check
          %p324 = pneg %p63
        $region46: #{tpu_custom_call.1} parent=43 // pred_check_branch
          %326 = sbr.rel (%p324) target = $region48
        $region47: #{tpu_custom_call.1} parent=43 // pred_region
          %s327 = sadd.s32 %s36, %s37
          %s328 = smul.u32 2, %s327
          %p329 = scmp.lt.s32.totalorder %s328, 3
          %s330 = scalar_select %p329, %s328, 3
          %s331 = smul.addr %s330, 4
          %s332 = scalar_lea.vmem %s1, %s331
          %s333 = sadd.s32 %s36, %s37
          %s334 = smul.u32 2, %s333
        $region48: #{tpu_custom_call.1} parent=43 // pred_fallthru
          _
        // Predicated region
        $region49: #{tpu_custom_call.1} parent=43 // pred_check
          %p335 = pneg %p91
        $region50: #{tpu_custom_call.1} parent=43 // pred_check_branch
          %337 = sbr.rel (%p335) target = $region52
        $region51: #{tpu_custom_call.1} parent=43 // pred_region
          %s338 = sadd.s32 %s36, %s37
          %s339 = smul.u32 2, %s338
          %p340 = scmp.lt.s32.totalorder %s339, 3
          %s341 = scalar_select %p340, %s339, 3
          %s342 = smul.addr %s341, 4
          %s343 = scalar_lea.vmem %s2, %s342
          %s344 = sadd.s32 %s36, %s37
          %s345 = smul.u32 2, %s344
        $region52: #{tpu_custom_call.1} parent=43 // pred_fallthru
          _
      $region44: #{tpu_custom_call.1} parent=5 // pred_fallthru
        _
      %p346 = scmp.le.s32.totalorder 1, %s29
      %p347 = scmp.lt.s32.totalorder %s29, 3
      %p348 = pnand %p346, %p347
      %p349 = pneg %p348
      // Predicated region
      $region53: #{tpu_custom_call.1} parent=5 // pred_check
        _
      $region54: #{tpu_custom_call.1} parent=5 // pred_check_branch
        %351 = sbr.rel (%p348) target = $region56
      $region55: #{tpu_custom_call.1} parent=5 // pred_region
        %s352 = ssub.s32 %s29, 1
        // Predicated region
        $region57: #{tpu_custom_call.1} parent=55 // pred_check
          %p353 = pneg %p118
        $region58: #{tpu_custom_call.1} parent=55 // pred_check_branch
          %355 = sbr.rel (%p353) target = $region60
        $region59: #{tpu_custom_call.1} parent=55 // pred_region
          %357 = dma.done [#allocation7], 16
        $region60: #{tpu_custom_call.1} parent=55 // pred_fallthru
          _
        // Predicated region
        $region61: #{tpu_custom_call.1} parent=55 // pred_check
          %p358 = pneg %p139
        $region62: #{tpu_custom_call.1} parent=55 // pred_check_branch
          %360 = sbr.rel (%p358) target = $region64
        $region63: #{tpu_custom_call.1} parent=55 // pred_region
          %362 = dma.done [#allocation9], 16
        $region64: #{tpu_custom_call.1} parent=55 // pred_fallthru
          _
        %363 = sfence
        %s364 = sadd.s32 %s38, %s39
        %s365 = smul.u32 2, %s364
        %p366 = scmp.lt.s32.totalorder %s365, 3
        %s367 = scalar_select %p366, %s365, 3
        %s368 = smul.addr %s367, 4
        %s369 = scalar_lea.vmem %s1, %s368
        %p370 = pneg %p69
        %p371 = pneg %p66
        %s372 = sadd.s32 %s38, %s39
        %s373 = smul.u32 2, %s372
        %p374 = scmp.lt.s32.totalorder %s373, 3
        %s375 = scalar_select %p374, %s373, 3
        %s376 = smul.addr %s375, 4
        %s377 = scalar_lea.vmem %s2, %s376
        %p378 = pneg %p97
        %p379 = pneg %p94
        %p380 = pneg %p118
        %p381 = pneg %p115
        %p382 = pneg %p139
        %p383 = pneg %p136
        %p384 = pneg %p160
        %p385 = pneg %p157
        %p386 = pneg %p181
        %p387 = pneg %p178
        %p388 = pneg %p202
        %p389 = pneg %p199
        %p390 = pneg %p223
        %p391 = pneg %p220
        %p392 = pneg %p244
        %p393 = pneg %p241
        %p394 = pneg %p270
        %p395 = pneg %p267
        %s396 = sand.u32 %s257, 1
        %s397 = scalar_lea.sflag [#allocation6], %s396
        %s398 = sand.u32 %s257, 1
        %s399 = smul.addr %s398, 8
        %s400 = scalar_lea.vmem [#allocation10], %s399
        %s401 = sadd.s32 %s38, %s39
        %s402 = smul.u32 2, %s401
        %p403 = scmp.lt.s32.totalorder %s402, 3
        %s404 = scalar_select %p403, %s402, 3
        %s405 = smul.addr %s404, 4
        %s406 = scalar_lea.vmem %s1, %s405
        %s407 = sadd.s32 %s38, %s39
        %s408 = smul.u32 2, %s407
        %s409 = sadd.s32 %s38, %s39
        %s410 = smul.u32 2, %s409
        %p411 = scmp.lt.s32.totalorder %s410, 3
        %s412 = scalar_select %p411, %s410, 3
        %s413 = smul.addr %s412, 4
        %s414 = scalar_lea.vmem %s2, %s413
        %s415 = sadd.s32 %s38, %s39
        %s416 = smul.u32 2, %s415
        %p417 = scmp.eq.s32.totalorder %s39, 0
        // Predicated region
        $region65: #{tpu_custom_call.1} parent=55 // pred_check
          %p418 = pneg %p417
        $region66: #{tpu_custom_call.1} parent=55 // pred_check_branch
          %420 = sbr.rel (%p418) target = $region68
        $region67: #{tpu_custom_call.1} parent=55 // pred_region
          %421 = vst [vmem:[#allocation2] sm:$0xff] 0.0
        $region68: #{tpu_custom_call.1} parent=55 // pred_fallthru
          _
        %s422 = sadd.s32 %s38, %s39
        %s423 = sld [smem:[#allocation4 + %s422]]
        %s424 = sld [smem:[#allocation5 + %s422]]
        %s425 = sld [smem:[#allocation8 + %s422]]
        %v426 = vld [vmem:[%s406] sm:$0xff]
        %v427 = vmul.f32 %v426, 2.0
        %v428 = vsub.f32 %v427, 1.0
        %v429 = vld [vmem:[%s414] sm:$0xff]
        %v430 = vstv %s424
        %v431 = vmul.f32 %v430, %v428
        %v432 = vstv %s425
        %v433 = vmul.f32 %v432, %v429
        %v434 = vadd.f32 %v431, %v433
        %v435 = vlaneseq
        %v436 = vand.u32 %v435, 127
        %v437 = vstv %s423
        %vm438 = vcmp.eq.s32.totalorder %v436, %v437
        %v439 = vld [vmem:[%s5] sm:$0xff]
        %v440 = vld [vmem:[%s5 + $0x8] sm:$0xff]
        %v441 = vld [vmem:[%s5 + $0x10] sm:$0xff]
        %v442 = vld [vmem:[%s5 + $0x18] sm:$0xff]
        %v443 = vsel %vm438, 1, 0
        %v444 = vcvt.s32.f32 %v443
        %v445 = vmul.f32 %v439, %v444
        %v446 = vmul.f32 %v440, %v444
        %v447 = vmul.f32 %v441, %v444
        %v448 = vmul.f32 %v442, %v444
        %449 = vadd.xlane.f32.xlu0 %v445
        %v450 = vpop.xlane.xlu0 %449
        %451 = vadd.xlane.f32.xlu0 %v446
        %v452 = vpop.xlane.xlu0 %451
        %453 = vadd.xlane.f32.xlu0 %v447
        %v454 = vpop.xlane.xlu0 %453
        %455 = vadd.xlane.f32.xlu0 %v448
        %v456 = vpop.xlane.xlu0 %455
        %v457 = vld [vmem:[%s6] sm:$0xff]
        %v458 = vld [vmem:[%s6 + $0x8] sm:$0xff]
        %v459 = vld [vmem:[%s6 + $0x10] sm:$0xff]
        %v460 = vld [vmem:[%s6 + $0x18] sm:$0xff]
        %462 = vst [vmem:[#allocation1] ss:$2 sm:$0xff] %v434
        %v463 = vld.sshfl [vmem:[#allocation1] sm:$0xff pattern:$0x75316420]
        %v464 = vld.sshfl [vmem:[#allocation1 + $0x8] sm:$0xff pattern:$0x75316420]
        %vm465 = vcmask 31744
        %v467 = vsel %vm465, %v457, 0
        %v470 = vsel %vm465, %v458, 0
        %v473 = vsel %vm465, %v459, 0
        %v476 = vsel %vm465, %v460, 0
        %vm478 = vcmask 1043456
        %v479 = vsel %vm478, %v463, 0
        %v481 = vsel %vm478, %v464, 0
        %483 = vmatpush.msra.mxu0 0.0
        %484 = vmatpush.msra.mxu0 0.0
        %485 = vmatpush.msra.mxu0 0.0
        %486 = vmatpush.msra.mxu0 0.0
        %487 = vmatpush.msra.mxu0 0.0
        %488 = vmatpush.msra.mxu0 0.0
        %489 = vmatpush.msra.mxu0 0.0
        %490 = vmatpush.msra.mxu0 0.0
        %491 = vmatpush.msra.mxu0 0.0
        %492 = vmatpush.msra.mxu0 0.0
        %493 = vmatpush.msra.mxu0 0.0
        %494 = vmatpush.msra.mxu0 0.0
        %495 = vmatpush.msra.mxu0 0.0
        %496 = vmatpush.msra.mxu0 0.0
        %497 = vmatpush.msra.mxu0 0.0
        %v498 = vand.u32 %v479, 4294901760
        %499 = vmatpush.msra.mxu0 %v498
        %v500 = vand.u32 %v467, 4294901760
        %v501 = vsub.f32 %v467, %v500
        %v502 = vand.u32 %v501, 4294901760
        %v503 = vsub.f32 %v501, %v502
        %v504 = vand.u32 %v503, 4294901760
        %505 = vmatmul.f32.gmra.mxu0 %v504
        %v506 = vpop.f32.mrf.mxu0
        %v507 = vadd.f32 %v450, %v506
        %v508 = vand.u32 %v470, 4294901760
        %v509 = vsub.f32 %v470, %v508
        %v510 = vand.u32 %v509, 4294901760
        %v511 = vsub.f32 %v509, %v510
        %v512 = vand.u32 %v511, 4294901760
        %513 = vmatmul.f32.gmra.mxu0 %v512
        %v514 = vpop.f32.mrf.mxu0
        %v515 = vadd.f32 %v452, %v514
        %v516 = vand.u32 %v473, 4294901760
        %v517 = vsub.f32 %v473, %v516
        %v518 = vand.u32 %v517, 4294901760
        %v519 = vsub.f32 %v517, %v518
        %v520 = vand.u32 %v519, 4294901760
        %521 = vmatmul.f32.gmra.mxu0 %v520
        %v522 = vpop.f32.mrf.mxu0
        %v523 = vadd.f32 %v454, %v522
        %v524 = vand.u32 %v476, 4294901760
        %v525 = vsub.f32 %v476, %v524
        %v526 = vand.u32 %v525, 4294901760
        %v527 = vsub.f32 %v525, %v526
        %v528 = vand.u32 %v527, 4294901760
        %529 = vmatmul.f32.gmra.mxu0 %v528
        %v530 = vpop.f32.mrf.mxu0
        %v531 = vadd.f32 %v456, %v530
        %532 = vdwg.mxu0
        %533 = vmatpush.msra.mxu0 0.0
        %534 = vmatpush.msra.mxu0 0.0
        %535 = vmatpush.msra.mxu0 0.0
        %536 = vmatpush.msra.mxu0 0.0
        %537 = vmatpush.msra.mxu0 0.0
        %538 = vmatpush.msra.mxu0 0.0
        %539 = vmatpush.msra.mxu0 0.0
        %540 = vmatpush.msra.mxu0 0.0
        %541 = vmatpush.msra.mxu0 0.0
        %542 = vmatpush.msra.mxu0 0.0
        %543 = vmatpush.msra.mxu0 0.0
        %544 = vmatpush.msra.mxu0 0.0
        %545 = vmatpush.msra.mxu0 0.0
        %546 = vmatpush.msra.mxu0 0.0
        %547 = vmatpush.msra.mxu0 0.0
        %v548 = vand.u32 %v479, 4294901760
        %v549 = vsub.f32 %v479, %v548
        %v550 = vand.u32 %v549, 4294901760
        %v551 = vsub.f32 %v549, %v550
        %v552 = vand.u32 %v551, 4294901760
        %553 = vmatpush.msra.mxu0 %v552
        %v554 = vand.u32 %v467, 4294901760
        %555 = vmatmul.f32.gmra.mxu0 %v554
        %v556 = vpop.f32.mrf.mxu0
        %v557 = vadd.f32 %v507, %v556
        %v558 = vand.u32 %v470, 4294901760
        %559 = vmatmul.f32.gmra.mxu0 %v558
        %v560 = vpop.f32.mrf.mxu0
        %v561 = vadd.f32 %v515, %v560
        %v562 = vand.u32 %v473, 4294901760
        %563 = vmatmul.f32.gmra.mxu0 %v562
        %v564 = vpop.f32.mrf.mxu0
        %v565 = vadd.f32 %v523, %v564
        %v566 = vand.u32 %v476, 4294901760
        %567 = vmatmul.f32.gmra.mxu0 %v566
        %v568 = vpop.f32.mrf.mxu0
        %v569 = vadd.f32 %v531, %v568
        %570 = vdwg.mxu0
        %571 = vmatpush.msra.mxu0 0.0
        %572 = vmatpush.msra.mxu0 0.0
        %573 = vmatpush.msra.mxu0 0.0
        %574 = vmatpush.msra.mxu0 0.0
        %575 = vmatpush.msra.mxu0 0.0
        %576 = vmatpush.msra.mxu0 0.0
        %577 = vmatpush.msra.mxu0 0.0
        %578 = vmatpush.msra.mxu0 0.0
        %579 = vmatpush.msra.mxu0 0.0
        %580 = vmatpush.msra.mxu0 0.0
        %581 = vmatpush.msra.mxu0 0.0
        %582 = vmatpush.msra.mxu0 0.0
        %583 = vmatpush.msra.mxu0 0.0
        %584 = vmatpush.msra.mxu0 0.0
        %585 = vmatpush.msra.mxu0 0.0
        %v586 = vand.u32 %v479, 4294901760
        %v587 = vsub.f32 %v479, %v586
        %588 = vmatpush.msra.mxu0 %v587
        %v589 = vand.u32 %v467, 4294901760
        %v590 = vsub.f32 %v467, %v589
        %591 = vmatmul.f32.gmra.mxu0 %v590
        %v592 = vpop.f32.mrf.mxu0
        %v593 = vadd.f32 %v557, %v592
        %v594 = vand.u32 %v470, 4294901760
        %v595 = vsub.f32 %v470, %v594
        %596 = vmatmul.f32.gmra.mxu0 %v595
        %v597 = vpop.f32.mrf.mxu0
        %v598 = vadd.f32 %v561, %v597
        %v599 = vand.u32 %v473, 4294901760
        %v600 = vsub.f32 %v473, %v599
        %601 = vmatmul.f32.gmra.mxu0 %v600
        %v602 = vpop.f32.mrf.mxu0
        %v603 = vadd.f32 %v565, %v602
        %v604 = vand.u32 %v476, 4294901760
        %v605 = vsub.f32 %v476, %v604
        %606 = vmatmul.f32.gmra.mxu0 %v605
        %v607 = vpop.f32.mrf.mxu0
        %v608 = vadd.f32 %v569, %v607
        %609 = vdwg.mxu0
        %610 = vmatpush.msra.mxu0 0.0
        %611 = vmatpush.msra.mxu0 0.0
        %612 = vmatpush.msra.mxu0 0.0
        %613 = vmatpush.msra.mxu0 0.0
        %614 = vmatpush.msra.mxu0 0.0
        %615 = vmatpush.msra.mxu0 0.0
        %616 = vmatpush.msra.mxu0 0.0
        %617 = vmatpush.msra.mxu0 0.0
        %618 = vmatpush.msra.mxu0 0.0
        %619 = vmatpush.msra.mxu0 0.0
        %620 = vmatpush.msra.mxu0 0.0
        %621 = vmatpush.msra.mxu0 0.0
        %622 = vmatpush.msra.mxu0 0.0
        %623 = vmatpush.msra.mxu0 0.0
        %624 = vmatpush.msra.mxu0 0.0
        %v625 = vand.u32 %v479, 4294901760
        %626 = vmatpush.msra.mxu0 %v625
        %v627 = vand.u32 %v467, 4294901760
        %v628 = vsub.f32 %v467, %v627
        %v629 = vand.u32 %v628, 4294901760
        %630 = vmatmul.f32.gmra.mxu0 %v629
        %v631 = vpop.f32.mrf.mxu0
        %v632 = vadd.f32 %v593, %v631
        %v633 = vand.u32 %v470, 4294901760
        %v634 = vsub.f32 %v470, %v633
        %v635 = vand.u32 %v634, 4294901760
        %636 = vmatmul.f32.gmra.mxu0 %v635
        %v637 = vpop.f32.mrf.mxu0
        %v638 = vadd.f32 %v598, %v637
        %v639 = vand.u32 %v473, 4294901760
        %v640 = vsub.f32 %v473, %v639
        %v641 = vand.u32 %v640, 4294901760
        %642 = vmatmul.f32.gmra.mxu0 %v641
        %v643 = vpop.f32.mrf.mxu0
        %v644 = vadd.f32 %v603, %v643
        %v645 = vand.u32 %v476, 4294901760
        %v646 = vsub.f32 %v476, %v645
        %v647 = vand.u32 %v646, 4294901760
        %648 = vmatmul.f32.gmra.mxu0 %v647
        %v649 = vpop.f32.mrf.mxu0
        %v650 = vadd.f32 %v608, %v649
        %651 = vdwg.mxu0
        %652 = vmatpush.msra.mxu0 0.0
        %653 = vmatpush.msra.mxu0 0.0
        %654 = vmatpush.msra.mxu0 0.0
        %655 = vmatpush.msra.mxu0 0.0
        %656 = vmatpush.msra.mxu0 0.0
        %657 = vmatpush.msra.mxu0 0.0
        %658 = vmatpush.msra.mxu0 0.0
        %659 = vmatpush.msra.mxu0 0.0
        %660 = vmatpush.msra.mxu0 0.0
        %661 = vmatpush.msra.mxu0 0.0
        %662 = vmatpush.msra.mxu0 0.0
        %663 = vmatpush.msra.mxu0 0.0
        %664 = vmatpush.msra.mxu0 0.0
        %665 = vmatpush.msra.mxu0 0.0
        %666 = vmatpush.msra.mxu0 0.0
        %v667 = vand.u32 %v479, 4294901760
        %v668 = vsub.f32 %v479, %v667
        %v669 = vand.u32 %v668, 4294901760
        %670 = vmatpush.msra.mxu0 %v669
        %v671 = vand.u32 %v467, 4294901760
        %672 = vmatmul.f32.gmra.mxu0 %v671
        %v673 = vpop.f32.mrf.mxu0
        %v674 = vadd.f32 %v632, %v673
        %v675 = vand.u32 %v470, 4294901760
        %676 = vmatmul.f32.gmra.mxu0 %v675
        %v677 = vpop.f32.mrf.mxu0
        %v678 = vadd.f32 %v638, %v677
        %v679 = vand.u32 %v473, 4294901760
        %680 = vmatmul.f32.gmra.mxu0 %v679
        %v681 = vpop.f32.mrf.mxu0
        %v682 = vadd.f32 %v644, %v681
        %v683 = vand.u32 %v476, 4294901760
        %684 = vmatmul.f32.gmra.mxu0 %v683
        %v685 = vpop.f32.mrf.mxu0
        %v686 = vadd.f32 %v650, %v685
        %687 = vdwg.mxu0
        %688 = vmatpush.msra.mxu0 0.0
        %689 = vmatpush.msra.mxu0 0.0
        %690 = vmatpush.msra.mxu0 0.0
        %691 = vmatpush.msra.mxu0 0.0
        %692 = vmatpush.msra.mxu0 0.0
        %693 = vmatpush.msra.mxu0 0.0
        %694 = vmatpush.msra.mxu0 0.0
        %695 = vmatpush.msra.mxu0 0.0
        %696 = vmatpush.msra.mxu0 0.0
        %697 = vmatpush.msra.mxu0 0.0
        %698 = vmatpush.msra.mxu0 0.0
        %699 = vmatpush.msra.mxu0 0.0
        %700 = vmatpush.msra.mxu0 0.0
        %701 = vmatpush.msra.mxu0 0.0
        %702 = vmatpush.msra.mxu0 0.0
        %v703 = vand.u32 %v479, 4294901760
        %704 = vmatpush.msra.mxu0 %v703
        %v705 = vand.u32 %v467, 4294901760
        %706 = vmatmul.f32.gmra.mxu0 %v705
        %v707 = vpop.f32.mrf.mxu0
        %v708 = vadd.f32 %v674, %v707
        %v709 = vand.u32 %v470, 4294901760
        %710 = vmatmul.f32.gmra.mxu0 %v709
        %v711 = vpop.f32.mrf.mxu0
        %v712 = vadd.f32 %v678, %v711
        %v713 = vand.u32 %v473, 4294901760
        %714 = vmatmul.f32.gmra.mxu0 %v713
        %v715 = vpop.f32.mrf.mxu0
        %v716 = vadd.f32 %v682, %v715
        %v717 = vand.u32 %v476, 4294901760
        %718 = vmatmul.f32.gmra.mxu0 %v717
        %v719 = vpop.f32.mrf.mxu0
        %v720 = vadd.f32 %v686, %v719
        %721 = vdwg.mxu0
        %722 = vmatpush.msra.mxu0 0.0
        %723 = vmatpush.msra.mxu0 0.0
        %724 = vmatpush.msra.mxu0 0.0
        %725 = vmatpush.msra.mxu0 0.0
        %726 = vmatpush.msra.mxu0 0.0
        %727 = vmatpush.msra.mxu0 0.0
        %728 = vmatpush.msra.mxu0 0.0
        %729 = vmatpush.msra.mxu0 0.0
        %730 = vmatpush.msra.mxu0 0.0
        %731 = vmatpush.msra.mxu0 0.0
        %732 = vmatpush.msra.mxu0 0.0
        %733 = vmatpush.msra.mxu0 0.0
        %734 = vmatpush.msra.mxu0 0.0
        %735 = vmatpush.msra.mxu0 0.0
        %736 = vmatpush.msra.mxu0 0.0
        %v737 = vand.u32 %v481, 4294901760
        %738 = vmatpush.msra.mxu0 %v737
        %v739 = vand.u32 %v467, 4294901760
        %v740 = vsub.f32 %v467, %v739
        %v741 = vand.u32 %v740, 4294901760
        %v742 = vsub.f32 %v740, %v741
        %v743 = vand.u32 %v742, 4294901760
        %744 = vmatmul.f32.gmra.mxu0 %v743
        %v745 = vpop.f32.mrf.mxu0
        %v746 = vadd.f32 %v450, %v745
        %v747 = vand.u32 %v470, 4294901760
        %v748 = vsub.f32 %v470, %v747
        %v749 = vand.u32 %v748, 4294901760
        %v750 = vsub.f32 %v748, %v749
        %v751 = vand.u32 %v750, 4294901760
        %752 = vmatmul.f32.gmra.mxu0 %v751
        %v753 = vpop.f32.mrf.mxu0
        %v754 = vadd.f32 %v452, %v753
        %v755 = vand.u32 %v473, 4294901760
        %v756 = vsub.f32 %v473, %v755
        %v757 = vand.u32 %v756, 4294901760
        %v758 = vsub.f32 %v756, %v757
        %v759 = vand.u32 %v758, 4294901760
        %760 = vmatmul.f32.gmra.mxu0 %v759
        %v761 = vpop.f32.mrf.mxu0
        %v762 = vadd.f32 %v454, %v761
        %v763 = vand.u32 %v476, 4294901760
        %v764 = vsub.f32 %v476, %v763
        %v765 = vand.u32 %v764, 4294901760
        %v766 = vsub.f32 %v764, %v765
        %v767 = vand.u32 %v766, 4294901760
        %768 = vmatmul.f32.gmra.mxu0 %v767
        %v769 = vpop.f32.mrf.mxu0
        %v770 = vadd.f32 %v456, %v769
        %771 = vdwg.mxu0
        %772 = vmatpush.msra.mxu0 0.0
        %773 = vmatpush.msra.mxu0 0.0
        %774 = vmatpush.msra.mxu0 0.0
        %775 = vmatpush.msra.mxu0 0.0
        %776 = vmatpush.msra.mxu0 0.0
        %777 = vmatpush.msra.mxu0 0.0
        %778 = vmatpush.msra.mxu0 0.0
        %779 = vmatpush.msra.mxu0 0.0
        %780 = vmatpush.msra.mxu0 0.0
        %781 = vmatpush.msra.mxu0 0.0
        %782 = vmatpush.msra.mxu0 0.0
        %783 = vmatpush.msra.mxu0 0.0
        %784 = vmatpush.msra.mxu0 0.0
        %785 = vmatpush.msra.mxu0 0.0
        %786 = vmatpush.msra.mxu0 0.0
        %v787 = vand.u32 %v481, 4294901760
        %v788 = vsub.f32 %v481, %v787
        %v789 = vand.u32 %v788, 4294901760
        %v790 = vsub.f32 %v788, %v789
        %v791 = vand.u32 %v790, 4294901760
        %792 = vmatpush.msra.mxu0 %v791
        %v793 = vand.u32 %v467, 4294901760
        %794 = vmatmul.f32.gmra.mxu0 %v793
        %v795 = vpop.f32.mrf.mxu0
        %v796 = vadd.f32 %v746, %v795
        %v797 = vand.u32 %v470, 4294901760
        %798 = vmatmul.f32.gmra.mxu0 %v797
        %v799 = vpop.f32.mrf.mxu0
        %v800 = vadd.f32 %v754, %v799
        %v801 = vand.u32 %v473, 4294901760
        %802 = vmatmul.f32.gmra.mxu0 %v801
        %v803 = vpop.f32.mrf.mxu0
        %v804 = vadd.f32 %v762, %v803
        %v805 = vand.u32 %v476, 4294901760
        %806 = vmatmul.f32.gmra.mxu0 %v805
        %v807 = vpop.f32.mrf.mxu0
        %v808 = vadd.f32 %v770, %v807
        %809 = vdwg.mxu0
        %810 = vmatpush.msra.mxu0 0.0
        %811 = vmatpush.msra.mxu0 0.0
        %812 = vmatpush.msra.mxu0 0.0
        %813 = vmatpush.msra.mxu0 0.0
        %814 = vmatpush.msra.mxu0 0.0
        %815 = vmatpush.msra.mxu0 0.0
        %816 = vmatpush.msra.mxu0 0.0
        %817 = vmatpush.msra.mxu0 0.0
        %818 = vmatpush.msra.mxu0 0.0
        %819 = vmatpush.msra.mxu0 0.0
        %820 = vmatpush.msra.mxu0 0.0
        %821 = vmatpush.msra.mxu0 0.0
        %822 = vmatpush.msra.mxu0 0.0
        %823 = vmatpush.msra.mxu0 0.0
        %824 = vmatpush.msra.mxu0 0.0
        %v825 = vand.u32 %v481, 4294901760
        %v826 = vsub.f32 %v481, %v825
        %827 = vmatpush.msra.mxu0 %v826
        %v828 = vand.u32 %v467, 4294901760
        %v829 = vsub.f32 %v467, %v828
        %830 = vmatmul.f32.gmra.mxu0 %v829
        %v831 = vpop.f32.mrf.mxu0
        %v832 = vadd.f32 %v796, %v831
        %v833 = vand.u32 %v470, 4294901760
        %v834 = vsub.f32 %v470, %v833
        %835 = vmatmul.f32.gmra.mxu0 %v834
        %v836 = vpop.f32.mrf.mxu0
        %v837 = vadd.f32 %v800, %v836
        %v838 = vand.u32 %v473, 4294901760
        %v839 = vsub.f32 %v473, %v838
        %840 = vmatmul.f32.gmra.mxu0 %v839
        %v841 = vpop.f32.mrf.mxu0
        %v842 = vadd.f32 %v804, %v841
        %v843 = vand.u32 %v476, 4294901760
        %v844 = vsub.f32 %v476, %v843
        %845 = vmatmul.f32.gmra.mxu0 %v844
        %v846 = vpop.f32.mrf.mxu0
        %v847 = vadd.f32 %v808, %v846
        %848 = vdwg.mxu0
        %849 = vmatpush.msra.mxu0 0.0
        %850 = vmatpush.msra.mxu0 0.0
        %851 = vmatpush.msra.mxu0 0.0
        %852 = vmatpush.msra.mxu0 0.0
        %853 = vmatpush.msra.mxu0 0.0
        %854 = vmatpush.msra.mxu0 0.0
        %855 = vmatpush.msra.mxu0 0.0
        %856 = vmatpush.msra.mxu0 0.0
        %857 = vmatpush.msra.mxu0 0.0
        %858 = vmatpush.msra.mxu0 0.0
        %859 = vmatpush.msra.mxu0 0.0
        %860 = vmatpush.msra.mxu0 0.0
        %861 = vmatpush.msra.mxu0 0.0
        %862 = vmatpush.msra.mxu0 0.0
        %863 = vmatpush.msra.mxu0 0.0
        %v864 = vand.u32 %v481, 4294901760
        %865 = vmatpush.msra.mxu0 %v864
        %v866 = vand.u32 %v467, 4294901760
        %v867 = vsub.f32 %v467, %v866
        %v868 = vand.u32 %v867, 4294901760
        %869 = vmatmul.f32.gmra.mxu0 %v868
        %v870 = vpop.f32.mrf.mxu0
        %v871 = vadd.f32 %v832, %v870
        %v872 = vand.u32 %v470, 4294901760
        %v873 = vsub.f32 %v470, %v872
        %v874 = vand.u32 %v873, 4294901760
        %875 = vmatmul.f32.gmra.mxu0 %v874
        %v876 = vpop.f32.mrf.mxu0
        %v877 = vadd.f32 %v837, %v876
        %v878 = vand.u32 %v473, 4294901760
        %v879 = vsub.f32 %v473, %v878
        %v880 = vand.u32 %v879, 4294901760
        %881 = vmatmul.f32.gmra.mxu0 %v880
        %v882 = vpop.f32.mrf.mxu0
        %v883 = vadd.f32 %v842, %v882
        %v884 = vand.u32 %v476, 4294901760
        %v885 = vsub.f32 %v476, %v884
        %v886 = vand.u32 %v885, 4294901760
        %887 = vmatmul.f32.gmra.mxu0 %v886
        %v888 = vpop.f32.mrf.mxu0
        %v889 = vadd.f32 %v847, %v888
        %890 = vdwg.mxu0
        %891 = vmatpush.msra.mxu0 0.0
        %892 = vmatpush.msra.mxu0 0.0
        %893 = vmatpush.msra.mxu0 0.0
        %894 = vmatpush.msra.mxu0 0.0
        %895 = vmatpush.msra.mxu0 0.0
        %896 = vmatpush.msra.mxu0 0.0
        %897 = vmatpush.msra.mxu0 0.0
        %898 = vmatpush.msra.mxu0 0.0
        %899 = vmatpush.msra.mxu0 0.0
        %900 = vmatpush.msra.mxu0 0.0
        %901 = vmatpush.msra.mxu0 0.0
        %902 = vmatpush.msra.mxu0 0.0
        %903 = vmatpush.msra.mxu0 0.0
        %904 = vmatpush.msra.mxu0 0.0
        %905 = vmatpush.msra.mxu0 0.0
        %v906 = vand.u32 %v481, 4294901760
        %v907 = vsub.f32 %v481, %v906
        %v908 = vand.u32 %v907, 4294901760
        %909 = vmatpush.msra.mxu0 %v908
        %v910 = vand.u32 %v467, 4294901760
        %911 = vmatmul.f32.gmra.mxu0 %v910
        %v912 = vpop.f32.mrf.mxu0
        %v913 = vadd.f32 %v871, %v912
        %v914 = vand.u32 %v470, 4294901760
        %915 = vmatmul.f32.gmra.mxu0 %v914
        %v916 = vpop.f32.mrf.mxu0
        %v917 = vadd.f32 %v877, %v916
        %v918 = vand.u32 %v473, 4294901760
        %919 = vmatmul.f32.gmra.mxu0 %v918
        %v920 = vpop.f32.mrf.mxu0
        %v921 = vadd.f32 %v883, %v920
        %v922 = vand.u32 %v476, 4294901760
        %923 = vmatmul.f32.gmra.mxu0 %v922
        %v924 = vpop.f32.mrf.mxu0
        %v925 = vadd.f32 %v889, %v924
        %926 = vdwg.mxu0
        %927 = vmatpush.msra.mxu0 0.0
        %928 = vmatpush.msra.mxu0 0.0
        %929 = vmatpush.msra.mxu0 0.0
        %930 = vmatpush.msra.mxu0 0.0
        %931 = vmatpush.msra.mxu0 0.0
        %932 = vmatpush.msra.mxu0 0.0
        %933 = vmatpush.msra.mxu0 0.0
        %934 = vmatpush.msra.mxu0 0.0
        %935 = vmatpush.msra.mxu0 0.0
        %936 = vmatpush.msra.mxu0 0.0
        %937 = vmatpush.msra.mxu0 0.0
        %938 = vmatpush.msra.mxu0 0.0
        %939 = vmatpush.msra.mxu0 0.0
        %940 = vmatpush.msra.mxu0 0.0
        %941 = vmatpush.msra.mxu0 0.0
        %v942 = vand.u32 %v481, 4294901760
        %943 = vmatpush.msra.mxu0 %v942
        %v944 = vand.u32 %v467, 4294901760
        %945 = vmatmul.f32.gmra.mxu0 %v944
        %v946 = vpop.f32.mrf.mxu0
        %v947 = vadd.f32 %v913, %v946
        %v948 = vand.u32 %v470, 4294901760
        %949 = vmatmul.f32.gmra.mxu0 %v948
        %v950 = vpop.f32.mrf.mxu0
        %v951 = vadd.f32 %v917, %v950
        %v952 = vand.u32 %v473, 4294901760
        %953 = vmatmul.f32.gmra.mxu0 %v952
        %v954 = vpop.f32.mrf.mxu0
        %v955 = vadd.f32 %v921, %v954
        %v956 = vand.u32 %v476, 4294901760
        %957 = vmatmul.f32.gmra.mxu0 %v956
        %v958 = vpop.f32.mrf.mxu0
        %v959 = vadd.f32 %v925, %v958
        %960 = vdwg.mxu0
        %v961 = vld [vmem:[%s7] sm:$0xff]
        %v962 = vld [vmem:[%s7 + $0x8] sm:$0xff]
        %v963 = vld [vmem:[%s7 + $0x10] sm:$0xff]
        %v964 = vld [vmem:[%s7 + $0x18] sm:$0xff]
        %966 = vset.pattern.permute.xlu0 0
        %967 = vperm.xlu0 %966, %v961
        %v968 = vpop.permute.xlu0 %967
        %971 = vset.pattern.permute.xlu0 0
        %972 = vperm.xlu0 %971, %v962
        %v973 = vpop.permute.xlu0 %972
        %976 = vset.pattern.permute.xlu0 0
        %977 = vperm.xlu0 %976, %v963
        %v978 = vpop.permute.xlu0 %977
        %981 = vset.pattern.permute.xlu0 0
        %982 = vperm.xlu0 %981, %v964
        %v983 = vpop.permute.xlu0 %982
        %v985 = vadd.f32 %v708, %v968
        %v986 = vadd.f32 %v947, %v968
        %v987 = vadd.f32 %v712, %v973
        %v988 = vadd.f32 %v951, %v973
        %v989 = vadd.f32 %v716, %v978
        %v990 = vadd.f32 %v955, %v978
        %v991 = vadd.f32 %v720, %v983
        %v992 = vadd.f32 %v959, %v983
        %v993 = vmax.f32 %v985, 0.0
        %v994 = vmax.f32 %v986, 0.0
        %v995 = vmax.f32 %v987, 0.0
        %v996 = vmax.f32 %v988, 0.0
        %v997 = vmax.f32 %v989, 0.0
        %v998 = vmax.f32 %v990, 0.0
        %v999 = vmax.f32 %v991, 0.0
        %v1000 = vmax.f32 %v992, 0.0
        %v1001 = vld [vmem:[%s8] sm:$0xf]
        %v1002 = vld [vmem:[%s9] sm:$0xf]
        %1004 = vset.pattern.permute.xlu0 0
        %1005 = vperm.xlu0 %1004, %v1002
        %v1006 = vpop.permute.xlu0 %1005
        %vm1008 = vcmask 261120
        %v1010 = vsel %vm1008, %v1001, 0
        %1012 = vmatpush.msra.mxu0 0.0
        %1013 = vmatpush.msra.mxu0 0.0
        %1014 = vmatpush.msra.mxu0 0.0
        %1015 = vmatpush.msra.mxu0 0.0
        %1016 = vmatpush.msra.mxu0 0.0
        %1017 = vmatpush.msra.mxu0 0.0
        %1018 = vmatpush.msra.mxu0 0.0
        %1019 = vmatpush.msra.mxu0 0.0
        %1020 = vmatpush.msra.mxu0 0.0
        %1021 = vmatpush.msra.mxu0 0.0
        %1022 = vmatpush.msra.mxu0 0.0
        %1023 = vmatpush.msra.mxu0 0.0
        %v1024 = vand.u32 %v999, 4294901760
        %1025 = vmatpush.msra.mxu0 %v1024
        %v1026 = vand.u32 %v997, 4294901760
        %1027 = vmatpush.msra.mxu0 %v1026
        %v1028 = vand.u32 %v995, 4294901760
        %1029 = vmatpush.msra.mxu0 %v1028
        %v1030 = vand.u32 %v993, 4294901760
        %1031 = vmatpush.msra.mxu0 %v1030
        %v1032 = vand.u32 %v1010, 4294901760
        %v1033 = vsub.f32 %v1010, %v1032
        %v1034 = vand.u32 %v1033, 4294901760
        %v1035 = vsub.f32 %v1033, %v1034
        %v1036 = vand.u32 %v1035, 4294901760
        %1037 = vmatmul.f32.gmra.mxu0 %v1036
        %v1038 = vpop.f32.mrf.mxu0
        %v1039 = vadd.f32 %v1006, %v1038
        %1040 = vdwg.mxu0
        %1041 = vmatpush.msra.mxu0 0.0
        %1042 = vmatpush.msra.mxu0 0.0
        %1043 = vmatpush.msra.mxu0 0.0
        %1044 = vmatpush.msra.mxu0 0.0
        %1045 = vmatpush.msra.mxu0 0.0
        %1046 = vmatpush.msra.mxu0 0.0
        %1047 = vmatpush.msra.mxu0 0.0
        %1048 = vmatpush.msra.mxu0 0.0
        %1049 = vmatpush.msra.mxu0 0.0
        %1050 = vmatpush.msra.mxu0 0.0
        %1051 = vmatpush.msra.mxu0 0.0
        %1052 = vmatpush.msra.mxu0 0.0
        %v1053 = vand.u32 %v999, 4294901760
        %v1054 = vsub.f32 %v999, %v1053
        %v1055 = vand.u32 %v1054, 4294901760
        %v1056 = vsub.f32 %v1054, %v1055
        %v1057 = vand.u32 %v1056, 4294901760
        %1058 = vmatpush.msra.mxu0 %v1057
        %v1059 = vand.u32 %v997, 4294901760
        %v1060 = vsub.f32 %v997, %v1059
        %v1061 = vand.u32 %v1060, 4294901760
        %v1062 = vsub.f32 %v1060, %v1061
        %v1063 = vand.u32 %v1062, 4294901760
        %1064 = vmatpush.msra.mxu0 %v1063
        %v1065 = vand.u32 %v995, 4294901760
        %v1066 = vsub.f32 %v995, %v1065
        %v1067 = vand.u32 %v1066, 4294901760
        %v1068 = vsub.f32 %v1066, %v1067
        %v1069 = vand.u32 %v1068, 4294901760
        %1070 = vmatpush.msra.mxu0 %v1069
        %v1071 = vand.u32 %v993, 4294901760
        %v1072 = vsub.f32 %v993, %v1071
        %v1073 = vand.u32 %v1072, 4294901760
        %v1074 = vsub.f32 %v1072, %v1073
        %v1075 = vand.u32 %v1074, 4294901760
        %1076 = vmatpush.msra.mxu0 %v1075
        %v1077 = vand.u32 %v1010, 4294901760
        %1078 = vmatmul.f32.gmra.mxu0 %v1077
        %v1079 = vpop.f32.mrf.mxu0
        %v1080 = vadd.f32 %v1039, %v1079
        %1081 = vdwg.mxu0
        %1082 = vmatpush.msra.mxu0 0.0
        %1083 = vmatpush.msra.mxu0 0.0
        %1084 = vmatpush.msra.mxu0 0.0
        %1085 = vmatpush.msra.mxu0 0.0
        %1086 = vmatpush.msra.mxu0 0.0
        %1087 = vmatpush.msra.mxu0 0.0
        %1088 = vmatpush.msra.mxu0 0.0
        %1089 = vmatpush.msra.mxu0 0.0
        %1090 = vmatpush.msra.mxu0 0.0
        %1091 = vmatpush.msra.mxu0 0.0
        %1092 = vmatpush.msra.mxu0 0.0
        %1093 = vmatpush.msra.mxu0 0.0
        %v1094 = vand.u32 %v999, 4294901760
        %v1095 = vsub.f32 %v999, %v1094
        %1096 = vmatpush.msra.mxu0 %v1095
        %v1097 = vand.u32 %v997, 4294901760
        %v1098 = vsub.f32 %v997, %v1097
        %1099 = vmatpush.msra.mxu0 %v1098
        %v1100 = vand.u32 %v995, 4294901760
        %v1101 = vsub.f32 %v995, %v1100
        %1102 = vmatpush.msra.mxu0 %v1101
        %v1103 = vand.u32 %v993, 4294901760
        %v1104 = vsub.f32 %v993, %v1103
        %1105 = vmatpush.msra.mxu0 %v1104
        %v1106 = vand.u32 %v1010, 4294901760
        %v1107 = vsub.f32 %v1010, %v1106
        %1108 = vmatmul.f32.gmra.mxu0 %v1107
        %v1109 = vpop.f32.mrf.mxu0
        %v1110 = vadd.f32 %v1080, %v1109
        %1111 = vdwg.mxu0
        %1112 = vmatpush.msra.mxu0 0.0
        %1113 = vmatpush.msra.mxu0 0.0
        %1114 = vmatpush.msra.mxu0 0.0
        %1115 = vmatpush.msra.mxu0 0.0
        %1116 = vmatpush.msra.mxu0 0.0
        %1117 = vmatpush.msra.mxu0 0.0
        %1118 = vmatpush.msra.mxu0 0.0
        %1119 = vmatpush.msra.mxu0 0.0
        %1120 = vmatpush.msra.mxu0 0.0
        %1121 = vmatpush.msra.mxu0 0.0
        %1122 = vmatpush.msra.mxu0 0.0
        %1123 = vmatpush.msra.mxu0 0.0
        %v1124 = vand.u32 %v999, 4294901760
        %1125 = vmatpush.msra.mxu0 %v1124
        %v1126 = vand.u32 %v997, 4294901760
        %1127 = vmatpush.msra.mxu0 %v1126
        %v1128 = vand.u32 %v995, 4294901760
        %1129 = vmatpush.msra.mxu0 %v1128
        %v1130 = vand.u32 %v993, 4294901760
        %1131 = vmatpush.msra.mxu0 %v1130
        %v1132 = vand.u32 %v1010, 4294901760
        %v1133 = vsub.f32 %v1010, %v1132
        %v1134 = vand.u32 %v1133, 4294901760
        %1135 = vmatmul.f32.gmra.mxu0 %v1134
        %v1136 = vpop.f32.mrf.mxu0
        %v1137 = vadd.f32 %v1110, %v1136
        %1138 = vdwg.mxu0
        %1139 = vmatpush.msra.mxu0 0.0
        %1140 = vmatpush.msra.mxu0 0.0
        %1141 = vmatpush.msra.mxu0 0.0
        %1142 = vmatpush.msra.mxu0 0.0
        %1143 = vmatpush.msra.mxu0 0.0
        %1144 = vmatpush.msra.mxu0 0.0
        %1145 = vmatpush.msra.mxu0 0.0
        %1146 = vmatpush.msra.mxu0 0.0
        %1147 = vmatpush.msra.mxu0 0.0
        %1148 = vmatpush.msra.mxu0 0.0
        %1149 = vmatpush.msra.mxu0 0.0
        %1150 = vmatpush.msra.mxu0 0.0
        %v1151 = vand.u32 %v999, 4294901760
        %v1152 = vsub.f32 %v999, %v1151
        %v1153 = vand.u32 %v1152, 4294901760
        %1154 = vmatpush.msra.mxu0 %v1153
        %v1155 = vand.u32 %v997, 4294901760
        %v1156 = vsub.f32 %v997, %v1155
        %v1157 = vand.u32 %v1156, 4294901760
        %1158 = vmatpush.msra.mxu0 %v1157
        %v1159 = vand.u32 %v995, 4294901760
        %v1160 = vsub.f32 %v995, %v1159
        %v1161 = vand.u32 %v1160, 4294901760
        %1162 = vmatpush.msra.mxu0 %v1161
        %v1163 = vand.u32 %v993, 4294901760
        %v1164 = vsub.f32 %v993, %v1163
        %v1165 = vand.u32 %v1164, 4294901760
        %1166 = vmatpush.msra.mxu0 %v1165
        %v1167 = vand.u32 %v1010, 4294901760
        %1168 = vmatmul.f32.gmra.mxu0 %v1167
        %v1169 = vpop.f32.mrf.mxu0
        %v1170 = vadd.f32 %v1137, %v1169
        %1171 = vdwg.mxu0
        %1172 = vmatpush.msra.mxu0 0.0
        %1173 = vmatpush.msra.mxu0 0.0
        %1174 = vmatpush.msra.mxu0 0.0
        %1175 = vmatpush.msra.mxu0 0.0
        %1176 = vmatpush.msra.mxu0 0.0
        %1177 = vmatpush.msra.mxu0 0.0
        %1178 = vmatpush.msra.mxu0 0.0
        %1179 = vmatpush.msra.mxu0 0.0
        %1180 = vmatpush.msra.mxu0 0.0
        %1181 = vmatpush.msra.mxu0 0.0
        %1182 = vmatpush.msra.mxu0 0.0
        %1183 = vmatpush.msra.mxu0 0.0
        %v1184 = vand.u32 %v999, 4294901760
        %1185 = vmatpush.msra.mxu0 %v1184
        %v1186 = vand.u32 %v997, 4294901760
        %1187 = vmatpush.msra.mxu0 %v1186
        %v1188 = vand.u32 %v995, 4294901760
        %1189 = vmatpush.msra.mxu0 %v1188
        %v1190 = vand.u32 %v993, 4294901760
        %1191 = vmatpush.msra.mxu0 %v1190
        %v1192 = vand.u32 %v1010, 4294901760
        %1193 = vmatmul.f32.gmra.mxu0 %v1192
        %v1194 = vpop.f32.mrf.mxu0
        %v1195 = vadd.f32 %v1170, %v1194
        %1196 = vdwg.mxu0
        %1197 = vmatpush.msra.mxu0 0.0
        %1198 = vmatpush.msra.mxu0 0.0
        %1199 = vmatpush.msra.mxu0 0.0
        %1200 = vmatpush.msra.mxu0 0.0
        %1201 = vmatpush.msra.mxu0 0.0
        %1202 = vmatpush.msra.mxu0 0.0
        %1203 = vmatpush.msra.mxu0 0.0
        %1204 = vmatpush.msra.mxu0 0.0
        %1205 = vmatpush.msra.mxu0 0.0
        %1206 = vmatpush.msra.mxu0 0.0
        %1207 = vmatpush.msra.mxu0 0.0
        %1208 = vmatpush.msra.mxu0 0.0
        %v1209 = vand.u32 %v1000, 4294901760
        %1210 = vmatpush.msra.mxu0 %v1209
        %v1211 = vand.u32 %v998, 4294901760
        %1212 = vmatpush.msra.mxu0 %v1211
        %v1213 = vand.u32 %v996, 4294901760
        %1214 = vmatpush.msra.mxu0 %v1213
        %v1215 = vand.u32 %v994, 4294901760
        %1216 = vmatpush.msra.mxu0 %v1215
        %v1217 = vand.u32 %v1010, 4294901760
        %v1218 = vsub.f32 %v1010, %v1217
        %v1219 = vand.u32 %v1218, 4294901760
        %v1220 = vsub.f32 %v1218, %v1219
        %v1221 = vand.u32 %v1220, 4294901760
        %1222 = vmatmul.f32.gmra.mxu0 %v1221
        %v1223 = vpop.f32.mrf.mxu0
        %v1224 = vadd.f32 %v1006, %v1223
        %1225 = vdwg.mxu0
        %1226 = vmatpush.msra.mxu0 0.0
        %1227 = vmatpush.msra.mxu0 0.0
        %1228 = vmatpush.msra.mxu0 0.0
        %1229 = vmatpush.msra.mxu0 0.0
        %1230 = vmatpush.msra.mxu0 0.0
        %1231 = vmatpush.msra.mxu0 0.0
        %1232 = vmatpush.msra.mxu0 0.0
        %1233 = vmatpush.msra.mxu0 0.0
        %1234 = vmatpush.msra.mxu0 0.0
        %1235 = vmatpush.msra.mxu0 0.0
        %1236 = vmatpush.msra.mxu0 0.0
        %1237 = vmatpush.msra.mxu0 0.0
        %v1238 = vand.u32 %v1000, 4294901760
        %v1239 = vsub.f32 %v1000, %v1238
        %v1240 = vand.u32 %v1239, 4294901760
        %v1241 = vsub.f32 %v1239, %v1240
        %v1242 = vand.u32 %v1241, 4294901760
        %1243 = vmatpush.msra.mxu0 %v1242
        %v1244 = vand.u32 %v998, 4294901760
        %v1245 = vsub.f32 %v998, %v1244
        %v1246 = vand.u32 %v1245, 4294901760
        %v1247 = vsub.f32 %v1245, %v1246
        %v1248 = vand.u32 %v1247, 4294901760
        %1249 = vmatpush.msra.mxu0 %v1248
        %v1250 = vand.u32 %v996, 4294901760
        %v1251 = vsub.f32 %v996, %v1250
        %v1252 = vand.u32 %v1251, 4294901760
        %v1253 = vsub.f32 %v1251, %v1252
        %v1254 = vand.u32 %v1253, 4294901760
        %1255 = vmatpush.msra.mxu0 %v1254
        %v1256 = vand.u32 %v994, 4294901760
        %v1257 = vsub.f32 %v994, %v1256
        %v1258 = vand.u32 %v1257, 4294901760
        %v1259 = vsub.f32 %v1257, %v1258
        %v1260 = vand.u32 %v1259, 4294901760
        %1261 = vmatpush.msra.mxu0 %v1260
        %v1262 = vand.u32 %v1010, 4294901760
        %1263 = vmatmul.f32.gmra.mxu0 %v1262
        %v1264 = vpop.f32.mrf.mxu0
        %v1265 = vadd.f32 %v1224, %v1264
        %1266 = vdwg.mxu0
        %1267 = vmatpush.msra.mxu0 0.0
        %1268 = vmatpush.msra.mxu0 0.0
        %1269 = vmatpush.msra.mxu0 0.0
        %1270 = vmatpush.msra.mxu0 0.0
        %1271 = vmatpush.msra.mxu0 0.0
        %1272 = vmatpush.msra.mxu0 0.0
        %1273 = vmatpush.msra.mxu0 0.0
        %1274 = vmatpush.msra.mxu0 0.0
        %1275 = vmatpush.msra.mxu0 0.0
        %1276 = vmatpush.msra.mxu0 0.0
        %1277 = vmatpush.msra.mxu0 0.0
        %1278 = vmatpush.msra.mxu0 0.0
        %v1279 = vand.u32 %v1000, 4294901760
        %v1280 = vsub.f32 %v1000, %v1279
        %1281 = vmatpush.msra.mxu0 %v1280
        %v1282 = vand.u32 %v998, 4294901760
        %v1283 = vsub.f32 %v998, %v1282
        %1284 = vmatpush.msra.mxu0 %v1283
        %v1285 = vand.u32 %v996, 4294901760
        %v1286 = vsub.f32 %v996, %v1285
        %1287 = vmatpush.msra.mxu0 %v1286
        %v1288 = vand.u32 %v994, 4294901760
        %v1289 = vsub.f32 %v994, %v1288
        %1290 = vmatpush.msra.mxu0 %v1289
        %v1291 = vand.u32 %v1010, 4294901760
        %v1292 = vsub.f32 %v1010, %v1291
        %1293 = vmatmul.f32.gmra.mxu0 %v1292
        %v1294 = vpop.f32.mrf.mxu0
        %v1295 = vadd.f32 %v1265, %v1294
        %1296 = vdwg.mxu0
        %1297 = vmatpush.msra.mxu0 0.0
        %1298 = vmatpush.msra.mxu0 0.0
        %1299 = vmatpush.msra.mxu0 0.0
        %1300 = vmatpush.msra.mxu0 0.0
        %1301 = vmatpush.msra.mxu0 0.0
        %1302 = vmatpush.msra.mxu0 0.0
        %1303 = vmatpush.msra.mxu0 0.0
        %1304 = vmatpush.msra.mxu0 0.0
        %1305 = vmatpush.msra.mxu0 0.0
        %1306 = vmatpush.msra.mxu0 0.0
        %1307 = vmatpush.msra.mxu0 0.0
        %1308 = vmatpush.msra.mxu0 0.0
        %v1309 = vand.u32 %v1000, 4294901760
        %1310 = vmatpush.msra.mxu0 %v1309
        %v1311 = vand.u32 %v998, 4294901760
        %1312 = vmatpush.msra.mxu0 %v1311
        %v1313 = vand.u32 %v996, 4294901760
        %1314 = vmatpush.msra.mxu0 %v1313
        %v1315 = vand.u32 %v994, 4294901760
        %1316 = vmatpush.msra.mxu0 %v1315
        %v1317 = vand.u32 %v1010, 4294901760
        %v1318 = vsub.f32 %v1010, %v1317
        %v1319 = vand.u32 %v1318, 4294901760
        %1320 = vmatmul.f32.gmra.mxu0 %v1319
        %v1321 = vpop.f32.mrf.mxu0
        %v1322 = vadd.f32 %v1295, %v1321
        %1323 = vdwg.mxu0
        %1324 = vmatpush.msra.mxu0 0.0
        %1325 = vmatpush.msra.mxu0 0.0
        %1326 = vmatpush.msra.mxu0 0.0
        %1327 = vmatpush.msra.mxu0 0.0
        %1328 = vmatpush.msra.mxu0 0.0
        %1329 = vmatpush.msra.mxu0 0.0
        %1330 = vmatpush.msra.mxu0 0.0
        %1331 = vmatpush.msra.mxu0 0.0
        %1332 = vmatpush.msra.mxu0 0.0
        %1333 = vmatpush.msra.mxu0 0.0
        %1334 = vmatpush.msra.mxu0 0.0
        %1335 = vmatpush.msra.mxu0 0.0
        %v1336 = vand.u32 %v1000, 4294901760
        %v1337 = vsub.f32 %v1000, %v1336
        %v1338 = vand.u32 %v1337, 4294901760
        %1339 = vmatpush.msra.mxu0 %v1338
        %v1340 = vand.u32 %v998, 4294901760
        %v1341 = vsub.f32 %v998, %v1340
        %v1342 = vand.u32 %v1341, 4294901760
        %1343 = vmatpush.msra.mxu0 %v1342
        %v1344 = vand.u32 %v996, 4294901760
        %v1345 = vsub.f32 %v996, %v1344
        %v1346 = vand.u32 %v1345, 4294901760
        %1347 = vmatpush.msra.mxu0 %v1346
        %v1348 = vand.u32 %v994, 4294901760
        %v1349 = vsub.f32 %v994, %v1348
        %v1350 = vand.u32 %v1349, 4294901760
        %1351 = vmatpush.msra.mxu0 %v1350
        %v1352 = vand.u32 %v1010, 4294901760
        %1353 = vmatmul.f32.gmra.mxu0 %v1352
        %v1354 = vpop.f32.mrf.mxu0
        %v1355 = vadd.f32 %v1322, %v1354
        %1356 = vdwg.mxu0
        %1357 = vmatpush.msra.mxu0 0.0
        %1358 = vmatpush.msra.mxu0 0.0
        %1359 = vmatpush.msra.mxu0 0.0
        %1360 = vmatpush.msra.mxu0 0.0
        %1361 = vmatpush.msra.mxu0 0.0
        %1362 = vmatpush.msra.mxu0 0.0
        %1363 = vmatpush.msra.mxu0 0.0
        %1364 = vmatpush.msra.mxu0 0.0
        %1365 = vmatpush.msra.mxu0 0.0
        %1366 = vmatpush.msra.mxu0 0.0
        %1367 = vmatpush.msra.mxu0 0.0
        %1368 = vmatpush.msra.mxu0 0.0
        %v1369 = vand.u32 %v1000, 4294901760
        %1370 = vmatpush.msra.mxu0 %v1369
        %v1371 = vand.u32 %v998, 4294901760
        %1372 = vmatpush.msra.mxu0 %v1371
        %v1373 = vand.u32 %v996, 4294901760
        %1374 = vmatpush.msra.mxu0 %v1373
        %v1375 = vand.u32 %v994, 4294901760
        %1376 = vmatpush.msra.mxu0 %v1375
        %v1377 = vand.u32 %v1010, 4294901760
        %1378 = vmatmul.f32.gmra.mxu0 %v1377
        %v1379 = vpop.f32.mrf.mxu0
        %v1380 = vadd.f32 %v1355, %v1379
        %1381 = vdwg.mxu0
        %v1384 = vrot.slane %v1380, 4
        %v1385 = vsel %vm478, %v1195, %v1384
        %v1387 = vsub.f32 %v429, %v1385
        %v1388 = vld [vmem:[#allocation2] sm:$0xff]
        %v1389 = vmul.f32 %v1387, %v1387
        %v1390 = vadd.f32 %v1388, %v1389
        %1391 = vst [vmem:[#allocation2] sm:$0xff] %v1390
        // Predicated region
        $region69: #{tpu_custom_call.1} parent=55 // pred_check
          %p1392 = pneg %p417
        $region70: #{tpu_custom_call.1} parent=55 // pred_check_branch
          %1394 = sbr.rel (%p1392) target = $region72
        $region71: #{tpu_custom_call.1} parent=55 // pred_region
          %v1395 = vld [vmem:[#allocation2] sm:$0xff]
          %1396 = vst [vmem:[%s400] sm:$0xff] %v1395
        $region72: #{tpu_custom_call.1} parent=55 // pred_fallthru
          _
        %s1397 = sand.u32 %s257, 1
        %s1398 = scalar_lea.sflag [#allocation6], %s1397
        %s1399 = sand.u32 %s257, 1
        %s1400 = smul.addr %s1399, 8
        %s1401 = scalar_lea.vmem [#allocation10], %s1400
        // Predicated region
        $region73: #{tpu_custom_call.1} parent=55 // pred_check
          %p1402 = pneg %p267
        $region74: #{tpu_custom_call.1} parent=55 // pred_check_branch
          %1404 = sbr.rel (%p1402) target = $region76
        $region75: #{tpu_custom_call.1} parent=55 // pred_region
          %1406 = vsyncadd %s1398, 0
          %s1407 = smul.addr %s38, 2
          %s1408 = smul.addr %s1407, 4
          %s1409 = scalar_lea.hbm %s10, %s1408
          %s1411 = sshll.u32 %s1401, 4
          %s1412 = int_to_ptr.vmem [resolvable:$true] %s1411
          %s1413 = sshll.u32 %s1409, 4
          %s1414 = int_to_ptr.hbm [resolvable:$true] %s1413
          %1416 = dma.vmem_to_hbm [thread:$0]  %s1412, 128, %s1414, %s1398
        $region76: #{tpu_custom_call.1} parent=55 // pred_fallthru
          _
      $region56: #{tpu_custom_call.1} parent=5 // pred_fallthru
        _
      %p1417 = scmp.le.s32.totalorder 2, %s29
      // Predicated region
      $region77: #{tpu_custom_call.1} parent=5 // pred_check
        %p1418 = pneg %p1417
      $region78: #{tpu_custom_call.1} parent=5 // pred_check_branch
        %1420 = sbr.rel (%p1418) target = $region80
      $region79: #{tpu_custom_call.1} parent=5 // pred_region
        %s1421 = ssub.s32 %s29, 2
        // Predicated region
        $region81: #{tpu_custom_call.1} parent=79 // pred_check
          %p1422 = pneg %p273
        $region82: #{tpu_custom_call.1} parent=79 // pred_check_branch
          %1424 = sbr.rel (%p1422) target = $region84
        $region83: #{tpu_custom_call.1} parent=79 // pred_region
          %s1425 = sand.u32 %s258, 1
          %s1426 = scalar_lea.sflag [#allocation6], %s1425
          %s1427 = sand.u32 %s258, 1
          %s1428 = smul.addr %s1427, 8
          %s1429 = scalar_lea.vmem [#allocation10], %s1428
          %1431 = dma.done %s1426, 128
        $region84: #{tpu_custom_call.1} parent=79 // pred_fallthru
          _
      $region80: #{tpu_custom_call.1} parent=5 // pred_fallthru
        _
    $region6: #{tpu_custom_call.1} parent=1 // loop_footer
      %s33 = sadd.s32 1, %s29
    $region7: #{tpu_custom_call.1} parent=1 // loop_footer_branch
      %28 = sbr.rel target = $region3
    $region8: #{tpu_custom_call.1} parent=1 // loop_exit
      _
    %1432 = vsyncpa [#allocation6], 1
    %s1433 = scalar_lea.sflag [#allocation6], 1
    %1434 = vsyncpa %s1433, 1
    %1435 = vsyncpa [#allocation7], 1
    %s1436 = scalar_lea.sflag [#allocation7], 1
    %1437 = vsyncpa %s1436, 1
    %1438 = vsyncpa [#allocation9], 1

</llo_original>
